<compile_context>
chip_gen: v7x
topology: tpu7x:2x2x1
jax: 0.10.0
libtpu: 0.0.40
codegen_flags: <defaults>
</compile_context>

<pallas_src>
import math
import functools

import jax
import jax.numpy as jnp
from jax.experimental import pallas as pl
from jax.experimental.pallas import tpu as pltpu


# ---------------------------------------------------------------------------
# small math helpers (used both inside the kernel and in the pure-JAX reference)
# ---------------------------------------------------------------------------
_GELU_C = math.sqrt(2.0 / math.pi)


def _gelu(x):
    # TODO(synk): PyTorch nn.GELU() defaults to exact erf-GELU; the tanh approximation is used
    # here (max deviation ~1e-3) because erf lowering is not guaranteed in Mosaic.
    return 0.5 * x * (1.0 + jnp.tanh(_GELU_C * (x + 0.044715 * x * x * x)))


def _const_spec(shape):
    # TODO(synk): pipeline_mode=pl.Buffered(1) would single-buffer these resident weights
    # (halves weight VMEM for large D); left at the default buffering for maximal portability.
    nd = len(shape)
    return pl.BlockSpec(tuple(shape), lambda i, _nd=nd: (0,) * _nd)


# ---------------------------------------------------------------------------
# fused token-learner kernel (one grid step = `Bt` batch elements)
# ---------------------------------------------------------------------------
def make_tokenlearner_kernel(Bt, T, Q, D, N, has_in_mask, has_q_mask):
    f32 = jnp.float32
    bf16 = jnp.bfloat16
    two_d = 2 * D

    def softmax_lanes(logits):                       # softmax over last dim (T on lanes), f32
        m = jnp.max(logits, axis=-1, keepdims=True)
        e = jnp.exp(logits - m)
        denom = jnp.sum(e, axis=-1, keepdims=True)
        return e * pl.reciprocal(denom, approx=True)

    def kernel(*refs):
        it = iter(refs)
        fv_ref = next(it)                            # (Bt, T, D) bf16
        qry_ref = next(it)                           # (Bt, Q, D) bf16
        im_ref = next(it) if has_in_mask else None   # (Bt, 1, T) f32
        qm_ref = next(it) if has_q_mask else None    # (Bt, Q, 1) f32
        (w_i1, b_i1, w_i2, b_i2, w_ff, b_ff, w_fq, w_w,
         w_g1, b_g1, w_g2, b_vg2, b_qg2, out_ref) = list(it)

        xb3 = fv_ref[...]                            # (Bt, T, D) bf16 — no f32 copy kept live
        xb2 = xb3.reshape(Bt * T, D)                 # copy-free when T % 16 == 0 (bf16 packing)

        if has_in_mask:
            valid_t = im_ref[...] > 0.5              # (Bt, 1, T) — hoisted once, reused below

        # ---- input_mlp: Linear -> GELU -> Linear (Dropouts = identity in eval) ----
        # TODO(synk): on v6e/v7x the GELU/tanh passes could run in bf16 (packed VPU/EUP rate);
        # kept in f32 so the same kernel is also optimal/correct on v5e.
        h1 = jnp.dot(xb2, w_i1[...], preferred_element_type=f32) + b_i1[...]
        h1 = _gelu(h1)
        sel = jnp.dot(h1.astype(bf16), w_i2[...], preferred_element_type=f32) + b_i2[...]

        # ---- pooled query (masked mean over q_len, f32 accumulation of the bf16 block) ----
        qryf = qry_ref[...].astype(f32)              # (Bt, Q, D) — Q is small
        if has_q_mask:
            qm = qm_ref[...]                         # (Bt, Q, 1) f32
            pooled = jnp.sum(qryf * qm, axis=1) / jnp.maximum(jnp.sum(qm, axis=1), 1e-6)
        else:
            pooled = jnp.mean(qryf, axis=1)          # (Bt, D)
        pooled_b = pooled.astype(bf16)

        # ---- second attention logits: w(tanh(fc_feat(Fv) + fc_query(pooled))) ----
        xf = jnp.dot(xb2, w_ff[...], preferred_element_type=f32) + b_ff[...]   # (Bt*T, D)
        qf = jnp.dot(pooled_b, w_fq[...], preferred_element_type=f32)          # (Bt, D)
        a_pre = jnp.tanh(xf.reshape(Bt, T, D) + qf[:, None, :])
        a_log = jnp.dot(a_pre.reshape(Bt * T, D).astype(bf16), w_w[...],
                        preferred_element_type=f32)                            # (Bt*T, N)

        # ---- fused branches: one transpose, one mask, one softmax, one batched einsum ----
        logits = jnp.concatenate([sel.reshape(Bt, T, N), a_log.reshape(Bt, T, N)], axis=-1)
        logits = jnp.swapaxes(logits, 1, 2)          # (Bt, 2N, T)
        if has_in_mask:
            logits = jnp.where(valid_t, logits, -1e9)
        p = softmax_lanes(logits)                    # f32 (Bt, 2N, T)
        feats = jnp.einsum('bkt,btd->bkd', p.astype(bf16), xb3,
                           preferred_element_type=f32)                         # (Bt, 2N, D)
        feat_sel = feats[:, :N, :]
        feat_qry = feats[:, N:, :]

        # ---- gates: ONE fused layer-1 matmul + VPU layer-2 (multiply + lane reduce) ----
        mean_fv = jnp.mean(xb3.astype(f32), axis=1)                            # (Bt, D)
        gate_in = jnp.concatenate([mean_fv, pooled], axis=0).astype(bf16)      # (2Bt, D)
        hg = _gelu(jnp.dot(gate_in, w_g1[...], preferred_element_type=f32) + b_g1[...])
        prod = hg * w_g2[...]                                                  # (2Bt, 4D)
        vg = _gelu(jnp.tanh(
            jnp.sum(prod[:Bt, :two_d], axis=-1, keepdims=True) + b_vg2[...]))  # (Bt, 1)
        qg = _gelu(jnp.tanh(
            jnp.sum(prod[Bt:, two_d:], axis=-1, keepdims=True) + b_qg2[...]))  # (Bt, 1)

        feat = vg[:, :, None] * feat_sel + qg[:, :, None] * feat_qry           # (Bt, N, D)

        # LayerNorm without affine (eps = 1e-5, PyTorch default)
        mu = jnp.mean(feat, axis=-1, keepdims=True)
        var = jnp.mean((feat - mu) ** 2, axis=-1, keepdims=True)
        out_ref[...] = ((feat - mu) * jax.lax.rsqrt(var + 1e-5)).astype(out_ref.dtype)

    return kernel


# ---------------------------------------------------------------------------
# generation-aware tiling helpers
# ---------------------------------------------------------------------------
def _chip_profile():
    """Returns (vmem_cap_bytes, num_tensorcores, target_mxu_rows) with safety headroom."""
    vmem_phys = None
    try:
        vmem_phys = int(pltpu.get_tpu_info().vmem_capacity_bytes)
    except Exception:
        vmem_phys = None
    kind = ""
    try:
        kind = jax.devices()[0].device_kind.lower()
    except Exception:
        pass
    is_v7 = ("v7" in kind) or ("tpu7" in kind)
    megacore = ("v4" in kind) or ("v5p" in kind) or is_v7 or (kind == "")
    num_tc = 2 if megacore else 1
    target_m = 128 if "v5" in kind else 256
    if vmem_phys is None:
        vmem_phys = (64 if (is_v7 or kind == "") else 128) * 1024 * 1024
    # Never request the full physical VMEM: leave headroom for compiler scratch/semaphores.
    vmem_cap = min(vmem_phys - 12 * 1024 * 1024, int(0.8 * vmem_phys))
    vmem_cap = max(vmem_cap, 24 * 1024 * 1024)
    return vmem_cap, num_tc, target_m


def _pick_batch_tile(B, T, Q, D, N, const_bytes, has_in_mask, has_q_mask,
                     vmem_cap, num_tc, target_m):
    def est(bt):
        # double-buffered blocks (bf16 activations in, f32 out) + resident weights (x2 default
        # pipeline buffering) + f32 working set (h1, xf, a_pre, logits, p, feats, gates).
        blk = 2 * bt * T * D + 2 * bt * Q * D + 4 * bt * N * D
        if has_in_mask:
            blk += 4 * bt * T
        if has_q_mask:
            blk += 4 * bt * Q
        work = 4 * bt * T * (4 * D + 8 * N) + 4 * bt * (16 * D + 8 * N)
        return 2 * const_bytes + 2 * blk + work

    divisors = [bt for bt in range(1, B + 1) if B % bt == 0]
    fitting = [bt for bt in divisors if est(bt) <= vmem_cap] or [1]
    if num_tc > 1:
        # prefer a grid-step count that splits evenly across the TensorCores
        pref = [bt for bt in fitting if (B // bt) % num_tc == 0]
        cand = pref or fitting
    else:
        cand = fitting
    # Smallest tile that already gives M = bt*T comfortably above the MXU row target; otherwise
    # the largest tile that fits (amortizes ~0.35us/step and fills MXU sublanes).
    for bt in sorted(cand):
        if bt * T >= 2 * target_m:
            return bt
    return max(cand)


# ---------------------------------------------------------------------------
# wrapper
# ---------------------------------------------------------------------------
def _prepare_consts(params):
    bf16, f32 = jnp.bfloat16, jnp.float32
    # Fused gate layer-1 weight: columns [0:2D] = video_gate, [2D:4D] = query_gate.
    w_g1 = jnp.concatenate([params["w_vg1"], params["w_qg1"]], axis=1)        # (D, 4D)
    b_g1 = jnp.concatenate([params["b_vg1"], params["b_qg1"]], axis=1)        # (1, 4D)
    # Gate layer-2 as a single row vector for the in-kernel VPU multiply + reduce.
    w_g2 = jnp.concatenate([params["w_vg2"][:, 0], params["w_qg2"][:, 0]])[None, :]  # (1, 4D)
    return [
        params["w_i1"].astype(bf16), params["b_i1"].astype(f32),
        params["w_i2"].astype(bf16), params["b_i2"].astype(f32),
        params["w_ff"].astype(bf16), params["b_ff"].astype(f32),
        params["w_fq"].astype(bf16),
        params["w_w"].astype(bf16),
        w_g1.astype(bf16), b_g1.astype(f32),
        w_g2.astype(f32),
        params["b_vg2"].astype(f32), params["b_qg2"].astype(f32),
    ]


def multimodal_token_compressor(Fv, query, mask=None, query_mask=None, params=None,
                                batch_tile=None):
    """Pallas forward of MultimodalTokenCompressor (eval mode).

    Returns (compressed_feats (B, compress_len, D) f32, compress_mask (B, compress_len) bool).
    """
    B, T, D = Fv.shape
    _, Q, _ = query.shape
    N = params["w_i2"].shape[1]                      # compress_len
    # T % 16 == 0 additionally makes the in-kernel bf16 (Bt,T,D)<->(Bt*T,D) reshapes copy-free.
    assert T % 8 == 0, "T must be a multiple of 8"

    has_in_mask = mask is not None
    has_q_mask = query_mask is not None

    # bf16 activations fed to the kernel (halves HBM->VMEM DMA for the dominant input);
    # bf16 matmul weights (halved VMEM, ~2x MXU on v6e/v7x); biases stay f32.
    fv_b = Fv.astype(jnp.bfloat16)
    qry_b = query.astype(jnp.bfloat16)
    consts = _prepare_consts(params)
    const_bytes = sum(int(c.size) * c.dtype.itemsize for c in consts)

    vmem_cap, num_tc, target_m = _chip_profile()
    bt = batch_tile if batch_tile is not None else _pick_batch_tile(
        B, T, Q, D, N, const_bytes, has_in_mask, has_q_mask, vmem_cap, num_tc, target_m)
    assert B % bt == 0
    nb = B // bt

    in_arrays = [fv_b, qry_b]
    in_specs = [pl.BlockSpec((bt, T, D), lambda i: (i, 0, 0)),
                pl.BlockSpec((bt, Q, D), lambda i: (i, 0, 0))]
    if has_in_mask:                                  # no dummy all-ones DMA on the unmasked path
        in_arrays.append(mask.astype(jnp.float32)[:, None, :])        # (B, 1, T)
        in_specs.append(pl.BlockSpec((bt, 1, T), lambda i: (i, 0, 0)))
    if has_q_mask:
        in_arrays.append(query_mask.astype(jnp.float32)[:, :, None])  # (B, Q, 1)
        in_specs.append(pl.BlockSpec((bt, Q, 1), lambda i: (i, 0, 0)))
    in_arrays += consts
    in_specs += [_const_spec(c.shape) for c in consts]
    out_specs = pl.BlockSpec((bt, N, D), lambda i: (i, 0, 0))          # lane-dense for D >= 128

    flops = int(4 * B * T * D * D + 8 * B * T * D * N + 18 * B * D * D)
    transcendentals = int(2 * B * T * D + 2 * B * N * T + 8 * B * D + 2 * B * N)
    bytes_accessed = int(const_bytes + 2 * B * T * D + 2 * B * Q * D + 4 * B * N * D
                         + (4 * B * T if has_in_mask else 0)
                         + (4 * B * Q if has_q_mask else 0))

    kernel = make_tokenlearner_kernel(bt, T, Q, D, N, has_in_mask, has_q_mask)
    compressed = pl.pallas_call(
        kernel,
        out_shape=jax.ShapeDtypeStruct((B, N, D), jnp.float32),
        grid=(nb,),
        in_specs=in_specs,
        out_specs=out_specs,
        compiler_params=pltpu.CompilerParams(
            dimension_semantics=("parallel",),
            vmem_limit_bytes=int(vmem_cap)),
        cost_estimate=pl.CostEstimate(flops=flops,
                                      transcendentals=transcendentals,
                                      bytes_accessed=bytes_accessed),
    )(*in_arrays)

    compress_mask = jnp.ones((B, N), dtype=bool)
    return compressed, compress_mask


# ---------------------------------------------------------------------------
# pure-JAX reference (same bf16 activation/weight casts; used only for verification)
# ---------------------------------------------------------------------------
def ref_multimodal_token_compressor(Fv, query, mask=None, query_mask=None, params=None):
    f32, bf16 = jnp.float32, jnp.bfloat16

    def mm(a, w, b=None):
        y = jnp.einsum('...i,io->...o', a.astype(bf16), w.astype(bf16),
                       preferred_element_type=f32)
        return y if b is None else y + b

    B, T, D = Fv.shape
    N = params["w_i2"].shape[1]
    # The kernel receives bf16-quantized activations; mirror that here.
    x = Fv.astype(bf16).astype(f32)
    q = query.astype(bf16).astype(f32)

    sel = mm(_gelu(mm(x, params["w_i1"], params["b_i1"])), params["w_i2"], params["b_i2"])
    sel = jnp.swapaxes(sel, 1, 2)                                   # (B, N, T)
    if mask is not None:
        sel = jnp.where(mask[:, None, :], sel, -1e9)
    sel = jax.nn.softmax(sel, axis=-1)
    feat_sel = jnp.einsum('bnt,btd->bnd', sel.astype(bf16), x.astype(bf16),
                          preferred_element_type=f32)

    if query_mask is not None:
        qm = query_mask.astype(f32)[..., None]
        pooled = (q * qm).sum(1, keepdims=True) / jnp.maximum(qm.sum(1, keepdims=True), 1e-6)
    else:
        pooled = q.mean(1, keepdims=True)                           # (B, 1, D)

    attn = mm(x, params["w_ff"], params["b_ff"]) + mm(pooled, params["w_fq"])
    attn = jnp.swapaxes(mm(jnp.tanh(attn), params["w_w"]), 1, 2)    # (B, N, T)
    if mask is not None:
        attn = jnp.where(mask[:, None, :], attn, -1e9)
    attn = jax.nn.softmax(attn, axis=-1)
    feat_qry = jnp.einsum('bnt,btd->bnd', attn.astype(bf16), x.astype(bf16),
                          preferred_element_type=f32)

    def gate(inp, w1, b1, w2, b2):
        h = _gelu(mm(inp, w1, b1))
        # layer-2 kept in f32 to mirror the kernel's VPU multiply+reduce path
        g = jnp.einsum('...i,io->...o', h, w2.astype(f32)) + b2
        return _gelu(jnp.tanh(g))

    vg = gate(x.mean(1, keepdims=True), params["w_vg1"], params["b_vg1"],
              params["w_vg2"], params["b_vg2"])                     # (B, 1, 1)
    qg = gate(pooled, params["w_qg1"], params["b_qg1"],
              params["w_qg2"], params["b_qg2"])                     # (B, 1, 1)

    feat = vg * feat_sel + qg * feat_qry
    mu = feat.mean(-1, keepdims=True)
    var = ((feat - mu) ** 2).mean(-1, keepdims=True)
    out = (feat - mu) * jax.lax.rsqrt(var + 1e-5)
    return out, jnp.ones((B, N), dtype=bool)


# ---------------------------------------------------------------------------
# deterministic synthetic parameters (shapes per MultimodalTokenLearner.__init__)
# ---------------------------------------------------------------------------
def init_params(key, D, compress_len):
    two_d = 2 * D
    ks = jax.random.split(key, 9)

    def lin(k, din, dout, bias=True):
        k1, k2 = jax.random.split(k)
        w = jax.random.normal(k1, (din, dout), jnp.float32) * (1.0 / math.sqrt(din))
        b = jax.random.normal(k2, (1, dout), jnp.float32) * 0.02 if bias else None
        return w, b

    p = {}
    p["w_i1"], p["b_i1"] = lin(ks[0], D, D)                 # input_mlp Linear(h, h)
    p["w_i2"], p["b_i2"] = lin(ks[1], D, compress_len)      # input_mlp Linear(h, num_tokens)
    p["w_ff"], p["b_ff"] = lin(ks[2], D, D)                 # fc_feat
    p["w_fq"], _ = lin(ks[3], D, D, bias=False)             # fc_query (no bias)
    p["w_w"], _ = lin(ks[4], D, compress_len, bias=False)   # w (no bias)
    p["w_vg1"], p["b_vg1"] = lin(ks[5], D, two_d)           # video_gate
    p["w_vg2"], p["b_vg2"] = lin(ks[6], two_d, 1)
    p["w_qg1"], p["b_qg1"] = lin(ks[7], D, two_d)           # query_gate
    p["w_qg2"], p["b_qg2"] = lin(ks[8], two_d, 1)
    return p


# ---------------------------------------------------------------------------
if __name__ == "__main__":
    B, T, Q, D, N = 4, 16, 8, 128, 8      # v_dim=128, compress_len=8, v_len=16, q_len=8
    key = jax.random.PRNGKey(0)
    kp, kf, kq = jax.random.split(key, 3)
    params = init_params(kp, D, N)

    Fv = jax.random.normal(kf, (B, T, D), jnp.float32)
    query = jax.random.normal(kq, (B, Q, D), jnp.float32)
    t_idx = jnp.arange(T)[None, :]
    q_idx = jnp.arange(Q)[None, :]
    mask = t_idx < jnp.array([[T], [10], [5], [12]])          # (B, T) bool, variable lengths
    query_mask = q_idx < jnp.array([[Q], [5], [3], [6]])      # (B, Q) bool

    fwd = jax.jit(functools.partial(multimodal_token_compressor, params=params))

    for (m, qm) in [(mask, query_mask), (None, None)]:
        out, cmask = fwd(Fv, query, m, qm)
        out = jax.block_until_ready(out)
        cmask = jax.block_until_ready(cmask)

        ref_out, ref_mask = ref_multimodal_token_compressor(Fv, query, m, qm, params=params)
        assert out.shape == (B, N, D) and cmask.shape == (B, N)
        assert bool(jnp.all(cmask)) and bool(jnp.all(ref_mask))
        err = float(jnp.max(jnp.abs(out - ref_out)))
        assert bool(jnp.allclose(out, ref_out, atol=1e-2, rtol=1e-2)), err

    print("KERNEL_OK")
</pallas_src>

<mosaic_0001>
module attributes {stable_mosaic.version = 11 : i64} {
  func.func @kernel(%arg0: i32, %arg1: memref<4x16x128xbf16, #tpu.memory_space<vmem>>, %arg2: memref<4x8x128xbf16, #tpu.memory_space<vmem>>, %arg3: memref<4x1x16xf32, #tpu.memory_space<vmem>>, %arg4: memref<4x8x1xf32, #tpu.memory_space<vmem>>, %arg5: memref<128x128xbf16, #tpu.memory_space<vmem>>, %arg6: memref<1x128xf32, #tpu.memory_space<vmem>>, %arg7: memref<128x8xbf16, #tpu.memory_space<vmem>>, %arg8: memref<1x8xf32, #tpu.memory_space<vmem>>, %arg9: memref<128x128xbf16, #tpu.memory_space<vmem>>, %arg10: memref<1x128xf32, #tpu.memory_space<vmem>>, %arg11: memref<128x128xbf16, #tpu.memory_space<vmem>>, %arg12: memref<128x8xbf16, #tpu.memory_space<vmem>>, %arg13: memref<128x512xbf16, #tpu.memory_space<vmem>>, %arg14: memref<1x512xf32, #tpu.memory_space<vmem>>, %arg15: memref<1x512xf32, #tpu.memory_space<vmem>>, %arg16: memref<1x1xf32, #tpu.memory_space<vmem>>, %arg17: memref<1x1xf32, #tpu.memory_space<vmem>>, %arg18: memref<4x8x128xf32, #tpu.memory_space<vmem>>) attributes {dimension_semantics = [#tpu.dimension_semantics<parallel>], iteration_bounds = array<i64: 1>, scalar_prefetch = 0 : i64, scratch_operands = 0 : i64, tpu.core_type = #tpu.core_type<tc>, window_params = [{transform_indices = @transform_0, window_bounds = array<i64: 4, 16, 128>}, {transform_indices = @transform_1, window_bounds = array<i64: 4, 8, 128>}, {transform_indices = @transform_2, window_bounds = array<i64: 4, 1, 16>}, {transform_indices = @transform_3, window_bounds = array<i64: 4, 8, 1>}, {pipeline_mode = #tpu.pipeline_mode<synchronous>, transform_indices = @transform_4, window_bounds = array<i64: 128, 128>}, {pipeline_mode = #tpu.pipeline_mode<synchronous>, transform_indices = @transform_5, window_bounds = array<i64: 1, 128>}, {pipeline_mode = #tpu.pipeline_mode<synchronous>, transform_indices = @transform_6, window_bounds = array<i64: 128, 8>}, {pipeline_mode = #tpu.pipeline_mode<synchronous>, transform_indices = @transform_7, window_bounds = array<i64: 1, 8>}, {pipeline_mode = #tpu.pipeline_mode<synchronous>, transform_indices = @transform_8, window_bounds = array<i64: 128, 128>}, {pipeline_mode = #tpu.pipeline_mode<synchronous>, transform_indices = @transform_9, window_bounds = array<i64: 1, 128>}, {pipeline_mode = #tpu.pipeline_mode<synchronous>, transform_indices = @transform_10, window_bounds = array<i64: 128, 128>}, {pipeline_mode = #tpu.pipeline_mode<synchronous>, transform_indices = @transform_11, window_bounds = array<i64: 128, 8>}, {pipeline_mode = #tpu.pipeline_mode<synchronous>, transform_indices = @transform_12, window_bounds = array<i64: 128, 512>}, {pipeline_mode = #tpu.pipeline_mode<synchronous>, transform_indices = @transform_13, window_bounds = array<i64: 1, 512>}, {pipeline_mode = #tpu.pipeline_mode<synchronous>, transform_indices = @transform_14, window_bounds = array<i64: 1, 512>}, {pipeline_mode = #tpu.pipeline_mode<synchronous>, transform_indices = @transform_15, window_bounds = array<i64: 1, 1>}, {pipeline_mode = #tpu.pipeline_mode<synchronous>, transform_indices = @transform_16, window_bounds = array<i64: 1, 1>}, {transform_indices = @transform_17, window_bounds = array<i64: 4, 8, 128>}]} {
    %c0 = arith.constant 0 : index
    %c0_0 = arith.constant 0 : index
    %c0_1 = arith.constant 0 : index
    %0 = vector.load %arg1[%c0, %c0_0, %c0_1] : memref<4x16x128xbf16, #tpu.memory_space<vmem>>, vector<4x16x128xbf16>
    %1 = vector.shape_cast %0 : vector<4x16x128xbf16> to vector<64x128xbf16>
    %c0_2 = arith.constant 0 : index
    %c0_3 = arith.constant 0 : index
    %c0_4 = arith.constant 0 : index
    %2 = vector.load %arg3[%c0_2, %c0_3, %c0_4] : memref<4x1x16xf32, #tpu.memory_space<vmem>>, vector<4x1x16xf32>
    %cst = arith.constant 5.000000e-01 : f32
    %3 = vector.broadcast %cst : f32 to vector<4x1x16xf32>
    %4 = arith.cmpf ogt, %2, %3 : vector<4x1x16xf32>
    %c0_5 = arith.constant 0 : index
    %c0_6 = arith.constant 0 : index
    %5 = vector.load %arg5[%c0_5, %c0_6] : memref<128x128xbf16, #tpu.memory_space<vmem>>, vector<128x128xbf16>
    %cst_7 = arith.constant dense<0.000000e+00> : vector<64x128xf32>
    %6 = tpu.matmul %1, %5, %cst_7 {dimension_numbers = #tpu.dot_dimension_numbers<[1], [0], [0], [1], [0, 0, 1, 1], [], []>} : vector<64x128xbf16>, vector<128x128xbf16>, vector<64x128xf32> -> vector<64x128xf32>
    %c0_8 = arith.constant 0 : index
    %c0_9 = arith.constant 0 : index
    %7 = vector.load %arg6[%c0_8, %c0_9] : memref<1x128xf32, #tpu.memory_space<vmem>>, vector<1x128xf32>
    %8 = vector.broadcast %7 : vector<1x128xf32> to vector<64x128xf32>
    %9 = arith.addf %6, %8 : vector<64x128xf32>
    %cst_10 = arith.constant 5.000000e-01 : f32
    %10 = vector.broadcast %cst_10 : f32 to vector<64x128xf32>
    %11 = arith.mulf %10, %9 : vector<64x128xf32>
    %cst_11 = arith.constant 4.471500e-02 : f32
    %12 = vector.broadcast %cst_11 : f32 to vector<64x128xf32>
    %13 = arith.mulf %12, %9 : vector<64x128xf32>
    %14 = arith.mulf %13, %9 : vector<64x128xf32>
    %15 = arith.mulf %14, %9 : vector<64x128xf32>
    %16 = arith.addf %9, %15 : vector<64x128xf32>
    %cst_12 = arith.constant 0.797884583 : f32
    %17 = vector.broadcast %cst_12 : f32 to vector<64x128xf32>
    %18 = arith.mulf %17, %16 : vector<64x128xf32>
    %19 = math.tanh %18 : vector<64x128xf32>
    %cst_13 = arith.constant 1.000000e+00 : f32
    %20 = vector.broadcast %cst_13 : f32 to vector<64x128xf32>
    %21 = arith.addf %20, %19 : vector<64x128xf32>
    %22 = arith.mulf %11, %21 : vector<64x128xf32>
    %23 = arith.truncf %22 : vector<64x128xf32> to vector<64x128xbf16>
    %c0_14 = arith.constant 0 : index
    %c0_15 = arith.constant 0 : index
    %24 = vector.load %arg7[%c0_14, %c0_15] : memref<128x8xbf16, #tpu.memory_space<vmem>>, vector<128x8xbf16>
    %cst_16 = arith.constant dense<0.000000e+00> : vector<64x8xf32>
    %25 = tpu.matmul %23, %24, %cst_16 {dimension_numbers = #tpu.dot_dimension_numbers<[1], [0], [0], [1], [0, 0, 1, 1], [], []>} : vector<64x128xbf16>, vector<128x8xbf16>, vector<64x8xf32> -> vector<64x8xf32>
    %c0_17 = arith.constant 0 : index
    %c0_18 = arith.constant 0 : index
    %26 = vector.load %arg8[%c0_17, %c0_18] : memref<1x8xf32, #tpu.memory_space<vmem>>, vector<1x8xf32>
    %27 = vector.broadcast %26 : vector<1x8xf32> to vector<64x8xf32>
    %28 = arith.addf %25, %27 : vector<64x8xf32>
    %c0_19 = arith.constant 0 : index
    %c0_20 = arith.constant 0 : index
    %c0_21 = arith.constant 0 : index
    %29 = vector.load %arg2[%c0_19, %c0_20, %c0_21] : memref<4x8x128xbf16, #tpu.memory_space<vmem>>, vector<4x8x128xbf16>
    %30 = arith.extf %29 : vector<4x8x128xbf16> to vector<4x8x128xf32>
    %c0_22 = arith.constant 0 : index
    %c0_23 = arith.constant 0 : index
    %c0_24 = arith.constant 0 : index
    %31 = vector.load %arg4[%c0_22, %c0_23, %c0_24] : memref<4x8x1xf32, #tpu.memory_space<vmem>>, vector<4x8x1xf32>
    %32 = vector.broadcast %31 : vector<4x8x1xf32> to vector<4x8x128xf32>
    %33 = arith.mulf %30, %32 : vector<4x8x128xf32>
    %cst_25 = arith.constant dense<0.000000e+00> : vector<4x128xf32>
    %34 = vector.multi_reduction <add>, %33, %cst_25 [1] : vector<4x8x128xf32> to vector<4x128xf32>
    %cst_26 = arith.constant dense<0.000000e+00> : vector<4x1xf32>
    %35 = vector.multi_reduction <add>, %31, %cst_26 [1] : vector<4x8x1xf32> to vector<4x1xf32>
    %cst_27 = arith.constant 9.99999997E-7 : f32
    %36 = vector.broadcast %cst_27 : f32 to vector<4x1xf32>
    %37 = arith.maximumf %35, %36 : vector<4x1xf32>
    %38 = vector.broadcast %37 : vector<4x1xf32> to vector<4x128xf32>
    %39 = arith.divf %34, %38 : vector<4x128xf32>
    %40 = arith.truncf %39 : vector<4x128xf32> to vector<4x128xbf16>
    %c0_28 = arith.constant 0 : index
    %c0_29 = arith.constant 0 : index
    %41 = vector.load %arg9[%c0_28, %c0_29] : memref<128x128xbf16, #tpu.memory_space<vmem>>, vector<128x128xbf16>
    %cst_30 = arith.constant dense<0.000000e+00> : vector<64x128xf32>
    %42 = tpu.matmul %1, %41, %cst_30 {dimension_numbers = #tpu.dot_dimension_numbers<[1], [0], [0], [1], [0, 0, 1, 1], [], []>} : vector<64x128xbf16>, vector<128x128xbf16>, vector<64x128xf32> -> vector<64x128xf32>
    %c0_31 = arith.constant 0 : index
    %c0_32 = arith.constant 0 : index
    %43 = vector.load %arg10[%c0_31, %c0_32] : memref<1x128xf32, #tpu.memory_space<vmem>>, vector<1x128xf32>
    %44 = vector.broadcast %43 : vector<1x128xf32> to vector<64x128xf32>
    %45 = arith.addf %42, %44 : vector<64x128xf32>
    %c0_33 = arith.constant 0 : index
    %c0_34 = arith.constant 0 : index
    %46 = vector.load %arg11[%c0_33, %c0_34] : memref<128x128xbf16, #tpu.memory_space<vmem>>, vector<128x128xbf16>
    %cst_35 = arith.constant dense<0.000000e+00> : vector<4x128xf32>
    %47 = tpu.matmul %40, %46, %cst_35 {dimension_numbers = #tpu.dot_dimension_numbers<[1], [0], [0], [1], [0, 0, 1, 1], [], []>} : vector<4x128xbf16>, vector<128x128xbf16>, vector<4x128xf32> -> vector<4x128xf32>
    %48 = vector.shape_cast %45 : vector<64x128xf32> to vector<4x16x128xf32>
    %49 = vector.shape_cast %47 : vector<4x128xf32> to vector<4x1x128xf32>
    %50 = vector.broadcast %49 : vector<4x1x128xf32> to vector<4x16x128xf32>
    %51 = arith.addf %48, %50 : vector<4x16x128xf32>
    %52 = math.tanh %51 : vector<4x16x128xf32>
    %53 = vector.shape_cast %52 : vector<4x16x128xf32> to vector<64x128xf32>
    %54 = arith.truncf %53 : vector<64x128xf32> to vector<64x128xbf16>
    %c0_36 = arith.constant 0 : index
    %c0_37 = arith.constant 0 : index
    %55 = vector.load %arg12[%c0_36, %c0_37] : memref<128x8xbf16, #tpu.memory_space<vmem>>, vector<128x8xbf16>
    %cst_38 = arith.constant dense<0.000000e+00> : vector<64x8xf32>
    %56 = tpu.matmul %54, %55, %cst_38 {dimension_numbers = #tpu.dot_dimension_numbers<[1], [0], [0], [1], [0, 0, 1, 1], [], []>} : vector<64x128xbf16>, vector<128x8xbf16>, vector<64x8xf32> -> vector<64x8xf32>
    %57 = vector.shape_cast %28 : vector<64x8xf32> to vector<4x16x8xf32>
    %58 = vector.shape_cast %56 : vector<64x8xf32> to vector<4x16x8xf32>
    %59 = tpu.concatenate %57, %58 in 2 : vector<4x16x8xf32>, vector<4x16x8xf32> -> vector<4x16x16xf32>
    %60 = tpu.transpose %59, [0, 2, 1] : vector<4x16x16xf32> -> vector<4x16x16xf32>
    %cst_39 = arith.constant -1.000000e+09 : f32
    %61 = vector.shape_cast %4 : vector<4x1x16xi1> to vector<4x1x16xi1>
    %62 = vector.broadcast %61 : vector<4x1x16xi1> to vector<4x16x16xi1>
    %63 = vector.broadcast %cst_39 : f32 to vector<4x16x16xf32>
    %64 = arith.select %62, %60, %63 : vector<4x16x16xi1>, vector<4x16x16xf32>
    %cst_40 = arith.constant dense<0xFF800000> : vector<4x16xf32>
    %65 = vector.multi_reduction <maximumf>, %64, %cst_40 [2] : vector<4x16x16xf32> to vector<4x16xf32>
    %66 = vector.shape_cast %65 : vector<4x16xf32> to vector<4x16x1xf32>
    %67 = vector.broadcast %66 : vector<4x16x1xf32> to vector<4x16x16xf32>
    %68 = arith.subf %64, %67 : vector<4x16x16xf32>
    %69 = math.exp %68 : vector<4x16x16xf32>
    %cst_41 = arith.constant dense<0.000000e+00> : vector<4x16xf32>
    %70 = vector.multi_reduction <add>, %69, %cst_41 [2] : vector<4x16x16xf32> to vector<4x16xf32>
    %71 = vector.shape_cast %70 : vector<4x16xf32> to vector<4x16x1xf32>
    %72 = tpu.reciprocal %71 {approx = true} : vector<4x16x1xf32> -> vector<4x16x1xf32>
    %73 = vector.broadcast %72 : vector<4x16x1xf32> to vector<4x16x16xf32>
    %74 = arith.mulf %69, %73 : vector<4x16x16xf32>
    %75 = arith.truncf %74 : vector<4x16x16xf32> to vector<4x16x16xbf16>
    "tpu.trace_start"() <{level = 10 : i32, message = "bkt,btd->bkd"}> : () -> ()
    %cst_42 = arith.constant dense<0.000000e+00> : vector<4x16x128xf32>
    %76 = tpu.matmul %75, %0, %cst_42 {dimension_numbers = #tpu.dot_dimension_numbers<[2], [1], [1], [2], [0, 0, 0, 1, 1, 2], [0], [0]>} : vector<4x16x16xbf16>, vector<4x16x128xbf16>, vector<4x16x128xf32> -> vector<4x16x128xf32>
    "tpu.trace_stop"() : () -> ()
    %77 = vector.extract_strided_slice %76 {offsets = [0, 0, 0], sizes = [4, 8, 128], strides = [1, 1, 1]} : vector<4x16x128xf32> to vector<4x8x128xf32>
    %78 = vector.extract_strided_slice %76 {offsets = [0, 8, 0], sizes = [4, 8, 128], strides = [1, 1, 1]} : vector<4x16x128xf32> to vector<4x8x128xf32>
    %79 = arith.extf %0 : vector<4x16x128xbf16> to vector<4x16x128xf32>
    %cst_43 = arith.constant dense<0.000000e+00> : vector<4x128xf32>
    %80 = vector.multi_reduction <add>, %79, %cst_43 [1] : vector<4x16x128xf32> to vector<4x128xf32>
    %cst_44 = arith.constant 1.600000e+01 : f32
    %81 = vector.broadcast %cst_44 : f32 to vector<4x128xf32>
    %82 = arith.divf %80, %81 : vector<4x128xf32>
    %83 = tpu.concatenate %82, %39 in 0 : vector<4x128xf32>, vector<4x128xf32> -> vector<8x128xf32>
    %84 = arith.truncf %83 : vector<8x128xf32> to vector<8x128xbf16>
    %c0_45 = arith.constant 0 : index
    %c0_46 = arith.constant 0 : index
    %85 = vector.load %arg13[%c0_45, %c0_46] : memref<128x512xbf16, #tpu.memory_space<vmem>>, vector<128x512xbf16>
    %cst_47 = arith.constant dense<0.000000e+00> : vector<8x512xf32>
    %86 = tpu.matmul %84, %85, %cst_47 {dimension_numbers = #tpu.dot_dimension_numbers<[1], [0], [0], [1], [0, 0, 1, 1], [], []>} : vector<8x128xbf16>, vector<128x512xbf16>, vector<8x512xf32> -> vector<8x512xf32>
    %c0_48 = arith.constant 0 : index
    %c0_49 = arith.constant 0 : index
    %87 = vector.load %arg14[%c0_48, %c0_49] : memref<1x512xf32, #tpu.memory_space<vmem>>, vector<1x512xf32>
    %88 = vector.broadcast %87 : vector<1x512xf32> to vector<8x512xf32>
    %89 = arith.addf %86, %88 : vector<8x512xf32>
    %cst_50 = arith.constant 5.000000e-01 : f32
    %90 = vector.broadcast %cst_50 : f32 to vector<8x512xf32>
    %91 = arith.mulf %90, %89 : vector<8x512xf32>
    %cst_51 = arith.constant 4.471500e-02 : f32
    %92 = vector.broadcast %cst_51 : f32 to vector<8x512xf32>
    %93 = arith.mulf %92, %89 : vector<8x512xf32>
    %94 = arith.mulf %93, %89 : vector<8x512xf32>
    %95 = arith.mulf %94, %89 : vector<8x512xf32>
    %96 = arith.addf %89, %95 : vector<8x512xf32>
    %cst_52 = arith.constant 0.797884583 : f32
    %97 = vector.broadcast %cst_52 : f32 to vector<8x512xf32>
    %98 = arith.mulf %97, %96 : vector<8x512xf32>
    %99 = math.tanh %98 : vector<8x512xf32>
    %cst_53 = arith.constant 1.000000e+00 : f32
    %100 = vector.broadcast %cst_53 : f32 to vector<8x512xf32>
    %101 = arith.addf %100, %99 : vector<8x512xf32>
    %102 = arith.mulf %91, %101 : vector<8x512xf32>
    %c0_54 = arith.constant 0 : index
    %c0_55 = arith.constant 0 : index
    %103 = vector.load %arg15[%c0_54, %c0_55] : memref<1x512xf32, #tpu.memory_space<vmem>>, vector<1x512xf32>
    %104 = vector.broadcast %103 : vector<1x512xf32> to vector<8x512xf32>
    %105 = arith.mulf %102, %104 : vector<8x512xf32>
    %106 = vector.extract_strided_slice %105 {offsets = [0, 0], sizes = [4, 256], strides = [1, 1]} : vector<8x512xf32> to vector<4x256xf32>
    %cst_56 = arith.constant dense<0.000000e+00> : vector<4xf32>
    %107 = vector.multi_reduction <add>, %106, %cst_56 [1] : vector<4x256xf32> to vector<4xf32>
    %108 = vector.shape_cast %107 : vector<4xf32> to vector<4x1xf32>
    %c0_57 = arith.constant 0 : index
    %c0_58 = arith.constant 0 : index
    %109 = vector.load %arg16[%c0_57, %c0_58] : memref<1x1xf32, #tpu.memory_space<vmem>>, vector<1x1xf32>
    %110 = vector.broadcast %109 : vector<1x1xf32> to vector<4x1xf32>
    %111 = arith.addf %108, %110 : vector<4x1xf32>
    %112 = math.tanh %111 : vector<4x1xf32>
    %cst_59 = arith.constant 5.000000e-01 : f32
    %113 = vector.broadcast %cst_59 : f32 to vector<4x1xf32>
    %114 = arith.mulf %113, %112 : vector<4x1xf32>
    %cst_60 = arith.constant 4.471500e-02 : f32
    %115 = vector.broadcast %cst_60 : f32 to vector<4x1xf32>
    %116 = arith.mulf %115, %112 : vector<4x1xf32>
    %117 = arith.mulf %116, %112 : vector<4x1xf32>
    %118 = arith.mulf %117, %112 : vector<4x1xf32>
    %119 = arith.addf %112, %118 : vector<4x1xf32>
    %cst_61 = arith.constant 0.797884583 : f32
    %120 = vector.broadcast %cst_61 : f32 to vector<4x1xf32>
    %121 = arith.mulf %120, %119 : vector<4x1xf32>
    %122 = math.tanh %121 : vector<4x1xf32>
    %cst_62 = arith.constant 1.000000e+00 : f32
    %123 = vector.broadcast %cst_62 : f32 to vector<4x1xf32>
    %124 = arith.addf %123, %122 : vector<4x1xf32>
    %125 = arith.mulf %114, %124 : vector<4x1xf32>
    %126 = vector.extract_strided_slice %105 {offsets = [4, 256], sizes = [4, 256], strides = [1, 1]} : vector<8x512xf32> to vector<4x256xf32>
    %cst_63 = arith.constant dense<0.000000e+00> : vector<4xf32>
    %127 = vector.multi_reduction <add>, %126, %cst_63 [1] : vector<4x256xf32> to vector<4xf32>
    %128 = vector.shape_cast %127 : vector<4xf32> to vector<4x1xf32>
    %c0_64 = arith.constant 0 : index
    %c0_65 = arith.constant 0 : index
    %129 = vector.load %arg17[%c0_64, %c0_65] : memref<1x1xf32, #tpu.memory_space<vmem>>, vector<1x1xf32>
    %130 = vector.broadcast %129 : vector<1x1xf32> to vector<4x1xf32>
    %131 = arith.addf %128, %130 : vector<4x1xf32>
    %132 = math.tanh %131 : vector<4x1xf32>
    %cst_66 = arith.constant 5.000000e-01 : f32
    %133 = vector.broadcast %cst_66 : f32 to vector<4x1xf32>
    %134 = arith.mulf %133, %132 : vector<4x1xf32>
    %cst_67 = arith.constant 4.471500e-02 : f32
    %135 = vector.broadcast %cst_67 : f32 to vector<4x1xf32>
    %136 = arith.mulf %135, %132 : vector<4x1xf32>
    %137 = arith.mulf %136, %132 : vector<4x1xf32>
    %138 = arith.mulf %137, %132 : vector<4x1xf32>
    %139 = arith.addf %132, %138 : vector<4x1xf32>
    %cst_68 = arith.constant 0.797884583 : f32
    %140 = vector.broadcast %cst_68 : f32 to vector<4x1xf32>
    %141 = arith.mulf %140, %139 : vector<4x1xf32>
    %142 = math.tanh %141 : vector<4x1xf32>
    %cst_69 = arith.constant 1.000000e+00 : f32
    %143 = vector.broadcast %cst_69 : f32 to vector<4x1xf32>
    %144 = arith.addf %143, %142 : vector<4x1xf32>
    %145 = arith.mulf %134, %144 : vector<4x1xf32>
    %146 = vector.shape_cast %125 : vector<4x1xf32> to vector<4x1x1xf32>
    %147 = vector.broadcast %146 : vector<4x1x1xf32> to vector<4x8x128xf32>
    %148 = arith.mulf %147, %77 : vector<4x8x128xf32>
    %149 = vector.shape_cast %145 : vector<4x1xf32> to vector<4x1x1xf32>
    %150 = vector.broadcast %149 : vector<4x1x1xf32> to vector<4x8x128xf32>
    %151 = arith.mulf %150, %78 : vector<4x8x128xf32>
    %152 = arith.addf %148, %151 : vector<4x8x128xf32>
    %cst_70 = arith.constant dense<0.000000e+00> : vector<4x8xf32>
    %153 = vector.multi_reduction <add>, %152, %cst_70 [2] : vector<4x8x128xf32> to vector<4x8xf32>
    %154 = vector.shape_cast %153 : vector<4x8xf32> to vector<4x8x1xf32>
    %cst_71 = arith.constant 1.280000e+02 : f32
    %155 = vector.broadcast %cst_71 : f32 to vector<4x8x1xf32>
    %156 = arith.divf %154, %155 : vector<4x8x1xf32>
    %157 = vector.broadcast %156 : vector<4x8x1xf32> to vector<4x8x128xf32>
    %158 = arith.subf %152, %157 : vector<4x8x128xf32>
    %159 = arith.mulf %158, %158 : vector<4x8x128xf32>
    %cst_72 = arith.constant dense<0.000000e+00> : vector<4x8xf32>
    %160 = vector.multi_reduction <add>, %159, %cst_72 [2] : vector<4x8x128xf32> to vector<4x8xf32>
    %161 = vector.shape_cast %160 : vector<4x8xf32> to vector<4x8x1xf32>
    %cst_73 = arith.constant 1.280000e+02 : f32
    %162 = vector.broadcast %cst_73 : f32 to vector<4x8x1xf32>
    %163 = arith.divf %161, %162 : vector<4x8x1xf32>
    %164 = vector.broadcast %156 : vector<4x8x1xf32> to vector<4x8x128xf32>
    %165 = arith.subf %152, %164 : vector<4x8x128xf32>
    %cst_74 = arith.constant 9.99999974E-6 : f32
    %166 = vector.broadcast %cst_74 : f32 to vector<4x8x1xf32>
    %167 = arith.addf %163, %166 : vector<4x8x1xf32>
    %168 = math.rsqrt %167 : vector<4x8x1xf32>
    %169 = vector.broadcast %168 : vector<4x8x1xf32> to vector<4x8x128xf32>
    %170 = arith.mulf %165, %169 : vector<4x8x128xf32>
    %c0_75 = arith.constant 0 : index
    %c0_76 = arith.constant 0 : index
    %c0_77 = arith.constant 0 : index
    %171 = vector.load %arg18[%c0_75, %c0_76, %c0_77] : memref<4x8x128xf32, #tpu.memory_space<vmem>>, vector<4x8x128xf32>
    tpu.vector_store %arg18[%c0_75, %c0_76, %c0_77], %170 {strides = array<i32>} : memref<4x8x128xf32, #tpu.memory_space<vmem>>, vector<4x8x128xf32>,
    return
  }
  func.func @transform_0(%arg0: i32) -> (i32, i32, i32) {
    %c0_i32 = arith.constant 0 : i32
    %c0_i32_0 = arith.constant 0 : i32
    %c0_i32_1 = arith.constant 0 : i32
    return %arg0, %c0_i32, %c0_i32_0 : i32, i32, i32
  }
  func.func @transform_1(%arg0: i32) -> (i32, i32, i32) {
    %c0_i32 = arith.constant 0 : i32
    %c0_i32_0 = arith.constant 0 : i32
    %c0_i32_1 = arith.constant 0 : i32
    return %arg0, %c0_i32, %c0_i32_0 : i32, i32, i32
  }
  func.func @transform_2(%arg0: i32) -> (i32, i32, i32) {
    %c0_i32 = arith.constant 0 : i32
    %c0_i32_0 = arith.constant 0 : i32
    %c0_i32_1 = arith.constant 0 : i32
    return %arg0, %c0_i32, %c0_i32_0 : i32, i32, i32
  }
  func.func @transform_3(%arg0: i32) -> (i32, i32, i32) {
    %c0_i32 = arith.constant 0 : i32
    %c0_i32_0 = arith.constant 0 : i32
    %c0_i32_1 = arith.constant 0 : i32
    return %arg0, %c0_i32, %c0_i32_0 : i32, i32, i32
  }
  func.func @transform_4(%arg0: i32) -> (i32, i32) {
    %c0_i32 = arith.constant 0 : i32
    %c0_i32_0 = arith.constant 0 : i32
    %c0_i32_1 = arith.constant 0 : i32
    return %c0_i32, %c0_i32_0 : i32, i32
  }
  func.func @transform_5(%arg0: i32) -> (i32, i32) {
    %c0_i32 = arith.constant 0 : i32
    %c0_i32_0 = arith.constant 0 : i32
    %c0_i32_1 = arith.constant 0 : i32
    return %c0_i32, %c0_i32_0 : i32, i32
  }
  func.func @transform_6(%arg0: i32) -> (i32, i32) {
    %c0_i32 = arith.constant 0 : i32
    %c0_i32_0 = arith.constant 0 : i32
    %c0_i32_1 = arith.constant 0 : i32
    return %c0_i32, %c0_i32_0 : i32, i32
  }
  func.func @transform_7(%arg0: i32) -> (i32, i32) {
    %c0_i32 = arith.constant 0 : i32
    %c0_i32_0 = arith.constant 0 : i32
    %c0_i32_1 = arith.constant 0 : i32
    return %c0_i32, %c0_i32_0 : i32, i32
  }
  func.func @transform_8(%arg0: i32) -> (i32, i32) {
    %c0_i32 = arith.constant 0 : i32
    %c0_i32_0 = arith.constant 0 : i32
    %c0_i32_1 = arith.constant 0 : i32
    return %c0_i32, %c0_i32_0 : i32, i32
  }
  func.func @transform_9(%arg0: i32) -> (i32, i32) {
    %c0_i32 = arith.constant 0 : i32
    %c0_i32_0 = arith.constant 0 : i32
    %c0_i32_1 = arith.constant 0 : i32
    return %c0_i32, %c0_i32_0 : i32, i32
  }
  func.func @transform_10(%arg0: i32) -> (i32, i32) {
    %c0_i32 = arith.constant 0 : i32
    %c0_i32_0 = arith.constant 0 : i32
    %c0_i32_1 = arith.constant 0 : i32
    return %c0_i32, %c0_i32_0 : i32, i32
  }
  func.func @transform_11(%arg0: i32) -> (i32, i32) {
    %c0_i32 = arith.constant 0 : i32
    %c0_i32_0 = arith.constant 0 : i32
    %c0_i32_1 = arith.constant 0 : i32
    return %c0_i32, %c0_i32_0 : i32, i32
  }
  func.func @transform_12(%arg0: i32) -> (i32, i32) {
    %c0_i32 = arith.constant 0 : i32
    %c0_i32_0 = arith.constant 0 : i32
    %c0_i32_1 = arith.constant 0 : i32
    return %c0_i32, %c0_i32_0 : i32, i32
  }
  func.func @transform_13(%arg0: i32) -> (i32, i32) {
    %c0_i32 = arith.constant 0 : i32
    %c0_i32_0 = arith.constant 0 : i32
    %c0_i32_1 = arith.constant 0 : i32
    return %c0_i32, %c0_i32_0 : i32, i32
  }
  func.func @transform_14(%arg0: i32) -> (i32, i32) {
    %c0_i32 = arith.constant 0 : i32
    %c0_i32_0 = arith.constant 0 : i32
    %c0_i32_1 = arith.constant 0 : i32
    return %c0_i32, %c0_i32_0 : i32, i32
  }
  func.func @transform_15(%arg0: i32) -> (i32, i32) {
    %c0_i32 = arith.constant 0 : i32
    %c0_i32_0 = arith.constant 0 : i32
    %c0_i32_1 = arith.constant 0 : i32
    return %c0_i32, %c0_i32_0 : i32, i32
  }
  func.func @transform_16(%arg0: i32) -> (i32, i32) {
    %c0_i32 = arith.constant 0 : i32
    %c0_i32_0 = arith.constant 0 : i32
    %c0_i32_1 = arith.constant 0 : i32
    return %c0_i32, %c0_i32_0 : i32, i32
  }
  func.func @transform_17(%arg0: i32) -> (i32, i32, i32) {
    %c0_i32 = arith.constant 0 : i32
    %c0_i32_0 = arith.constant 0 : i32
    %c0_i32_1 = arith.constant 0 : i32
    return %arg0, %c0_i32, %c0_i32_0 : i32, i32, i32
  }
}

</mosaic_0001>

<llo_original>
// kernel: multimodal_token_compressor.1
$region0: #{multimodal_token_compressor.1}
  #allocation0 [shape = 'u32[]', space=smem, size = 0x4, offset = 0x4, fixed_abs, tag = 'smem constant byte address 0x4 - core index']
  #allocation1 [shape = 'u32[144,128]{1,0:T(1,128)}', space=vmem, size = 0x12000, scoped, tag = 'internal scratch']
  #allocation2 [shape = 'f32[1,1]{1,0:T(1,128)S(1)}', space=vmem, size = 0x200, scoped, tag = 'scoped memory for multimodal_token_compressor.1']
  #allocation3 [shape = 'f32[1,1]{1,0:T(1,128)S(1)}', space=vmem, size = 0x200, scoped, tag = 'scoped memory for multimodal_token_compressor.1']
  %s0 = inlined_call_operand.hbm [shape: bf16[4,16,128], index: 0, kind: input, shape index: {}]
  %s1 = inlined_call_operand.hbm [shape: bf16[4,8,128], index: 1, kind: input, shape index: {}]
  %s2 = inlined_call_operand.hbm [shape: f32[4,1,16], index: 2, kind: input, shape index: {}]
  %s3 = inlined_call_operand.hbm [shape: f32[4,8,1], index: 3, kind: input, shape index: {}]
  %s4 = inlined_call_operand.hbm [shape: bf16[128,128], index: 4, kind: input, shape index: {}]
  %s5 = inlined_call_operand.hbm [shape: f32[1,128], index: 5, kind: input, shape index: {}]
  %s6 = inlined_call_operand.hbm [shape: bf16[128,8], index: 6, kind: input, shape index: {}]
  %s7 = inlined_call_operand.hbm [shape: f32[1,8], index: 7, kind: input, shape index: {}]
  %s8 = inlined_call_operand.hbm [shape: bf16[128,128], index: 8, kind: input, shape index: {}]
  %s9 = inlined_call_operand.hbm [shape: f32[1,128], index: 9, kind: input, shape index: {}]
  %s10 = inlined_call_operand.hbm [shape: bf16[128,128], index: 10, kind: input, shape index: {}]
  %s11 = inlined_call_operand.hbm [shape: bf16[128,8], index: 11, kind: input, shape index: {}]
  %s12 = inlined_call_operand.hbm [shape: bf16[128,512], index: 12, kind: input, shape index: {}]
  %s13 = inlined_call_operand.hbm [shape: f32[1,512], index: 13, kind: input, shape index: {}]
  %s14 = inlined_call_operand.hbm [shape: f32[1,512], index: 14, kind: input, shape index: {}]
  %s15 = inlined_call_operand.<no memory space> [shape: f32[1,1], index: 15, kind: input, shape index: {}]
  %s16 = inlined_call_operand.<no memory space> [shape: f32[1,1], index: 16, kind: input, shape index: {}]
  %s17 = inlined_call_operand.hbm [shape: f32[4,8,128], index: 17, kind: output, shape index: {}]
  %s18 = sld [smem:[#allocation0]]
  $region138: #{multimodal_token_compressor.1} parent=0
    _
  %s20 = ssub.s32 1, %s18
  %s21 = scalar_select 0, %s20, %s18
  %v22 = vstv %s15
  %23 = vst [vmem:[#allocation2] sm:$0x1] %v22
  %v24 = vstv %s16
  %25 = vst [vmem:[#allocation3] sm:$0x1] %v24
  $region1: #{multimodal_token_compressor.1} parent=0
    #allocation4 [shape = 'u8[16384]{0}', space=vmem, size = 0x4000, scoped, tag = 'input window, operand 0, single buffered']
    #allocation5 [shape = 's32[1]{0}', space=sflag, size = 0x4, scoped, tag = 'scoped memory for multimodal_token_compressor.1']
    #allocation6 [shape = 's32[1]{0}', space=sflag, size = 0x4, scoped, tag = 'scoped memory for multimodal_token_compressor.1']
    #allocation7 [shape = 'u8[8192]{0}', space=vmem, size = 0x2000, scoped, tag = 'input window, operand 1, single buffered']
    #allocation8 [shape = 's32[1]{0}', space=sflag, size = 0x4, scoped, tag = 'scoped memory for multimodal_token_compressor.1']
    #allocation9 [shape = 'u8[2048]{0}', space=vmem, size = 0x800, scoped, tag = 'input window, operand 2, single buffered']
    #allocation10 [shape = 'u8[16384]{0}', space=vmem, size = 0x4000, scoped, tag = 'input window, operand 3, single buffered']
    #allocation11 [shape = 's32[1]{0}', space=sflag, size = 0x4, scoped, tag = 'scoped memory for multimodal_token_compressor.1']
    #allocation12 [shape = 'u8[32768]{0}', space=vmem, size = 0x8000, scoped, tag = 'input window, operand 4, single buffered']
    #allocation13 [shape = 'u8[512]{0}', space=vmem, size = 0x400, scoped, tag = 'input window, operand 5, single buffered']
    #allocation14 [shape = 's32[1]{0}', space=sflag, size = 0x4, scoped, tag = 'scoped memory for multimodal_token_compressor.1']
    #allocation15 [shape = 'u8[32768]{0}', space=vmem, size = 0x8000, scoped, tag = 'input window, operand 6, single buffered']
    #allocation16 [shape = 'u8[512]{0}', space=vmem, size = 0x400, scoped, tag = 'input window, operand 7, single buffered']
    #allocation17 [shape = 's32[1]{0}', space=sflag, size = 0x4, scoped, tag = 'scoped memory for multimodal_token_compressor.1']
    #allocation18 [shape = 'u8[32768]{0}', space=vmem, size = 0x8000, scoped, tag = 'input window, operand 8, single buffered']
    #allocation19 [shape = 'u8[512]{0}', space=vmem, size = 0x400, scoped, tag = 'input window, operand 9, single buffered']
    #allocation20 [shape = 's32[1]{0}', space=sflag, size = 0x4, scoped, tag = 'scoped memory for multimodal_token_compressor.1']
    #allocation21 [shape = 'u8[32768]{0}', space=vmem, size = 0x8000, scoped, tag = 'input window, operand 10, single buffered']
    #allocation22 [shape = 'u8[32768]{0}', space=vmem, size = 0x8000, scoped, tag = 'input window, operand 11, single buffered']
    #allocation23 [shape = 's32[1]{0}', space=sflag, size = 0x4, scoped, tag = 'scoped memory for multimodal_token_compressor.1']
    #allocation24 [shape = 'u8[131072]{0}', space=vmem, size = 0x20000, scoped, tag = 'input window, operand 12, single buffered']
    #allocation25 [shape = 'u8[2048]{0}', space=vmem, size = 0x800, scoped, tag = 'input window, operand 13, single buffered']
    #allocation26 [shape = 's32[1]{0}', space=sflag, size = 0x4, scoped, tag = 'scoped memory for multimodal_token_compressor.1']
    #allocation27 [shape = 'u8[2048]{0}', space=vmem, size = 0x800, scoped, tag = 'input window, operand 14, single buffered']
    #allocation28 [shape = 'u8[16384]{0}', space=vmem, size = 0x4000, scoped, tag = 'output window, operand 0, single buffered']
    %26 = vsyncpa [#allocation5], 0
    %27 = vsyncpa [#allocation8], 0
    %28 = vsyncpa [#allocation11], 0
    %29 = vsyncpa [#allocation14], 0
    %30 = vsyncpa [#allocation17], 0
    %31 = vsyncpa [#allocation20], 0
    %32 = vsyncpa [#allocation23], 0
    %33 = vsyncpa [#allocation26], 0
    %34 = vsyncpa [#allocation6], 0
    // Predicated region
    $region2: #{multimodal_token_compressor.1} parent=1 // pred_check
      _
    $region3: #{multimodal_token_compressor.1} parent=1 // pred_check_branch
      %36 = sbr.rel (0) target = $region5
    $region4: #{multimodal_token_compressor.1} parent=1 // pred_region
      %s38 = ssub.s32 512, 512
      %39 = vsyncadd [#allocation5], %s38
      %s40 = sshll.u32 [#allocation4], 4
      %s41 = int_to_ptr.vmem [resolvable:$true] %s40
      %46 = dma.hbm_to_vmem [thread:$0]  %s0, 512, %s41, [#allocation5], 64, 64, 4
    $region5: #{multimodal_token_compressor.1} parent=1 // pred_fallthru
      _
    // Predicated region
    $region6: #{multimodal_token_compressor.1} parent=1 // pred_check
      _
    $region7: #{multimodal_token_compressor.1} parent=1 // pred_check_branch
      %48 = sbr.rel (0) target = $region9
    $region8: #{multimodal_token_compressor.1} parent=1 // pred_region
      %s50 = ssub.s32 256, 256
      %51 = vsyncadd [#allocation8], %s50
      %s52 = sshll.u32 [#allocation7], 4
      %s53 = int_to_ptr.vmem [resolvable:$true] %s52
      %58 = dma.hbm_to_vmem [thread:$0]  %s1, 256, %s53, [#allocation8], 64, 64, 4
    $region9: #{multimodal_token_compressor.1} parent=1 // pred_fallthru
      _
    // Predicated region
    $region10: #{multimodal_token_compressor.1} parent=1 // pred_check
      _
    $region11: #{multimodal_token_compressor.1} parent=1 // pred_check_branch
      %60 = sbr.rel (0) target = $region13
    $region12: #{multimodal_token_compressor.1} parent=1 // pred_region
      %s62 = ssub.s32 64, 64
      %63 = vsyncadd [#allocation8], %s62
      %s64 = sshll.u32 [#allocation9], 4
      %s65 = int_to_ptr.vmem [resolvable:$true] %s64
      %70 = dma.hbm_to_vmem [thread:$0]  %s2, 64, %s65, [#allocation8], 16, 16, 1
    $region13: #{multimodal_token_compressor.1} parent=1 // pred_fallthru
      _
    // Predicated region
    $region14: #{multimodal_token_compressor.1} parent=1 // pred_check
      _
    $region15: #{multimodal_token_compressor.1} parent=1 // pred_check_branch
      %72 = sbr.rel (0) target = $region17
    $region16: #{multimodal_token_compressor.1} parent=1 // pred_region
      %s74 = ssub.s32 512, 512
      %75 = vsyncadd [#allocation11], %s74
      %s76 = sshll.u32 [#allocation10], 4
      %s77 = int_to_ptr.vmem [resolvable:$true] %s76
      %82 = dma.hbm_to_vmem [thread:$0]  %s3, 512, %s77, [#allocation11], 128, 128, 8
    $region17: #{multimodal_token_compressor.1} parent=1 // pred_fallthru
      _
    // Predicated region
    $region18: #{multimodal_token_compressor.1} parent=1 // pred_check
      _
    $region19: #{multimodal_token_compressor.1} parent=1 // pred_check_branch
      %84 = sbr.rel (0) target = $region21
    $region20: #{multimodal_token_compressor.1} parent=1 // pred_region
      %s86 = ssub.s32 1024, 1024
      %87 = vsyncadd [#allocation11], %s86
      %s88 = sshll.u32 [#allocation12], 4
      %s89 = int_to_ptr.vmem [resolvable:$true] %s88
      %94 = dma.hbm_to_vmem [thread:$0]  %s4, 1024, %s89, [#allocation11], 64, 64, 4
    $region21: #{multimodal_token_compressor.1} parent=1 // pred_fallthru
      _
    // Predicated region
    $region22: #{multimodal_token_compressor.1} parent=1 // pred_check
      _
    $region23: #{multimodal_token_compressor.1} parent=1 // pred_check_branch
      %96 = sbr.rel (0) target = $region25
    $region24: #{multimodal_token_compressor.1} parent=1 // pred_region
      %s98 = ssub.s32 16, 16
      %99 = vsyncadd [#allocation14], %s98
      %s101 = sshll.u32 [#allocation13], 4
      %s102 = int_to_ptr.vmem [resolvable:$true] %s101
      %104 = dma.hbm_to_vmem [thread:$0]  %s5, 16, %s102, [#allocation14]
    $region25: #{multimodal_token_compressor.1} parent=1 // pred_fallthru
      _
    // Predicated region
    $region26: #{multimodal_token_compressor.1} parent=1 // pred_check
      _
    $region27: #{multimodal_token_compressor.1} parent=1 // pred_check_branch
      %106 = sbr.rel (0) target = $region29
    $region28: #{multimodal_token_compressor.1} parent=1 // pred_region
      %s108 = ssub.s32 1024, 1024
      %109 = vsyncadd [#allocation14], %s108
      %s110 = sshll.u32 [#allocation15], 4
      %s111 = int_to_ptr.vmem [resolvable:$true] %s110
      %116 = dma.hbm_to_vmem [thread:$0]  %s6, 1024, %s111, [#allocation14], 64, 64, 4
    $region29: #{multimodal_token_compressor.1} parent=1 // pred_fallthru
      _
    // Predicated region
    $region30: #{multimodal_token_compressor.1} parent=1 // pred_check
      _
    $region31: #{multimodal_token_compressor.1} parent=1 // pred_check_branch
      %118 = sbr.rel (0) target = $region33
    $region32: #{multimodal_token_compressor.1} parent=1 // pred_region
      %s120 = ssub.s32 16, 16
      %121 = vsyncadd [#allocation17], %s120
      %s123 = sshll.u32 [#allocation16], 4
      %s124 = int_to_ptr.vmem [resolvable:$true] %s123
      %126 = dma.hbm_to_vmem [thread:$0]  %s7, 16, %s124, [#allocation17]
    $region33: #{multimodal_token_compressor.1} parent=1 // pred_fallthru
      _
    // Predicated region
    $region34: #{multimodal_token_compressor.1} parent=1 // pred_check
      _
    $region35: #{multimodal_token_compressor.1} parent=1 // pred_check_branch
      %128 = sbr.rel (0) target = $region37
    $region36: #{multimodal_token_compressor.1} parent=1 // pred_region
      %s130 = ssub.s32 1024, 1024
      %131 = vsyncadd [#allocation17], %s130
      %s132 = sshll.u32 [#allocation18], 4
      %s133 = int_to_ptr.vmem [resolvable:$true] %s132
      %138 = dma.hbm_to_vmem [thread:$0]  %s8, 1024, %s133, [#allocation17], 64, 64, 4
    $region37: #{multimodal_token_compressor.1} parent=1 // pred_fallthru
      _
    // Predicated region
    $region38: #{multimodal_token_compressor.1} parent=1 // pred_check
      _
    $region39: #{multimodal_token_compressor.1} parent=1 // pred_check_branch
      %140 = sbr.rel (0) target = $region41
    $region40: #{multimodal_token_compressor.1} parent=1 // pred_region
      %s142 = ssub.s32 16, 16
      %143 = vsyncadd [#allocation20], %s142
      %s145 = sshll.u32 [#allocation19], 4
      %s146 = int_to_ptr.vmem [resolvable:$true] %s145
      %148 = dma.hbm_to_vmem [thread:$0]  %s9, 16, %s146, [#allocation20]
    $region41: #{multimodal_token_compressor.1} parent=1 // pred_fallthru
      _
    // Predicated region
    $region42: #{multimodal_token_compressor.1} parent=1 // pred_check
      _
    $region43: #{multimodal_token_compressor.1} parent=1 // pred_check_branch
      %150 = sbr.rel (0) target = $region45
    $region44: #{multimodal_token_compressor.1} parent=1 // pred_region
      %s152 = ssub.s32 1024, 1024
      %153 = vsyncadd [#allocation20], %s152
      %s154 = sshll.u32 [#allocation21], 4
      %s155 = int_to_ptr.vmem [resolvable:$true] %s154
      %160 = dma.hbm_to_vmem [thread:$0]  %s10, 1024, %s155, [#allocation20], 64, 64, 4
    $region45: #{multimodal_token_compressor.1} parent=1 // pred_fallthru
      _
    // Predicated region
    $region46: #{multimodal_token_compressor.1} parent=1 // pred_check
      _
    $region47: #{multimodal_token_compressor.1} parent=1 // pred_check_branch
      %162 = sbr.rel (0) target = $region49
    $region48: #{multimodal_token_compressor.1} parent=1 // pred_region
      %s164 = ssub.s32 1024, 1024
      %165 = vsyncadd [#allocation23], %s164
      %s166 = sshll.u32 [#allocation22], 4
      %s167 = int_to_ptr.vmem [resolvable:$true] %s166
      %172 = dma.hbm_to_vmem [thread:$0]  %s11, 1024, %s167, [#allocation23], 64, 64, 4
    $region49: #{multimodal_token_compressor.1} parent=1 // pred_fallthru
      _
    // Predicated region
    $region50: #{multimodal_token_compressor.1} parent=1 // pred_check
      _
    $region51: #{multimodal_token_compressor.1} parent=1 // pred_check_branch
      %174 = sbr.rel (0) target = $region53
    $region52: #{multimodal_token_compressor.1} parent=1 // pred_region
      %s176 = ssub.s32 4096, 4096
      %177 = vsyncadd [#allocation23], %s176
      %s178 = sshll.u32 [#allocation24], 4
      %s179 = int_to_ptr.vmem [resolvable:$true] %s178
      %184 = dma.hbm_to_vmem [thread:$0]  %s12, 4096, %s179, [#allocation23], 256, 256, 16
    $region53: #{multimodal_token_compressor.1} parent=1 // pred_fallthru
      _
    // Predicated region
    $region54: #{multimodal_token_compressor.1} parent=1 // pred_check
      _
    $region55: #{multimodal_token_compressor.1} parent=1 // pred_check_branch
      %186 = sbr.rel (0) target = $region57
    $region56: #{multimodal_token_compressor.1} parent=1 // pred_region
      %s188 = ssub.s32 64, 64
      %189 = vsyncadd [#allocation26], %s188
      %s191 = sshll.u32 [#allocation25], 4
      %s192 = int_to_ptr.vmem [resolvable:$true] %s191
      %194 = dma.hbm_to_vmem [thread:$0]  %s13, 64, %s192, [#allocation26]
    $region57: #{multimodal_token_compressor.1} parent=1 // pred_fallthru
      _
    // Predicated region
    $region58: #{multimodal_token_compressor.1} parent=1 // pred_check
      _
    $region59: #{multimodal_token_compressor.1} parent=1 // pred_check_branch
      %196 = sbr.rel (0) target = $region61
    $region60: #{multimodal_token_compressor.1} parent=1 // pred_region
      %s198 = ssub.s32 64, 64
      %199 = vsyncadd [#allocation26], %s198
      %s201 = sshll.u32 [#allocation27], 4
      %s202 = int_to_ptr.vmem [resolvable:$true] %s201
      %204 = dma.hbm_to_vmem [thread:$0]  %s14, 64, %s202, [#allocation26]
    $region61: #{multimodal_token_compressor.1} parent=1 // pred_fallthru
      _
    // Predicated region
    $region62: #{multimodal_token_compressor.1} parent=1 // pred_check
      _
    $region63: #{multimodal_token_compressor.1} parent=1 // pred_check_branch
      %206 = sbr.rel (0) target = $region65
    $region64: #{multimodal_token_compressor.1} parent=1 // pred_region
      _
    $region65: #{multimodal_token_compressor.1} parent=1 // pred_fallthru
      _
    // Predicated region
    $region66: #{multimodal_token_compressor.1} parent=1 // pred_check
      _
    $region67: #{multimodal_token_compressor.1} parent=1 // pred_check_branch
      %208 = sbr.rel (0) target = $region69
    $region68: #{multimodal_token_compressor.1} parent=1 // pred_region
      _
    $region69: #{multimodal_token_compressor.1} parent=1 // pred_fallthru
      _
    // Predicated region
    $region70: #{multimodal_token_compressor.1} parent=1 // pred_check
      _
    $region71: #{multimodal_token_compressor.1} parent=1 // pred_check_branch
      %210 = sbr.rel (0) target = $region73
    $region72: #{multimodal_token_compressor.1} parent=1 // pred_region
      %211 = dma.done [#allocation5], 512
    $region73: #{multimodal_token_compressor.1} parent=1 // pred_fallthru
      _
    // Predicated region
    $region74: #{multimodal_token_compressor.1} parent=1 // pred_check
      _
    $region75: #{multimodal_token_compressor.1} parent=1 // pred_check_branch
      %213 = sbr.rel (0) target = $region77
    $region76: #{multimodal_token_compressor.1} parent=1 // pred_region
      %214 = dma.done [#allocation8], 256
    $region77: #{multimodal_token_compressor.1} parent=1 // pred_fallthru
      _
    // Predicated region
    $region78: #{multimodal_token_compressor.1} parent=1 // pred_check
      _
    $region79: #{multimodal_token_compressor.1} parent=1 // pred_check_branch
      %216 = sbr.rel (0) target = $region81
    $region80: #{multimodal_token_compressor.1} parent=1 // pred_region
      %217 = dma.done [#allocation8], 64
    $region81: #{multimodal_token_compressor.1} parent=1 // pred_fallthru
      _
    // Predicated region
    $region82: #{multimodal_token_compressor.1} parent=1 // pred_check
      _
    $region83: #{multimodal_token_compressor.1} parent=1 // pred_check_branch
      %219 = sbr.rel (0) target = $region85
    $region84: #{multimodal_token_compressor.1} parent=1 // pred_region
      %220 = dma.done [#allocation11], 512
    $region85: #{multimodal_token_compressor.1} parent=1 // pred_fallthru
      _
    // Predicated region
    $region86: #{multimodal_token_compressor.1} parent=1 // pred_check
      _
    $region87: #{multimodal_token_compressor.1} parent=1 // pred_check_branch
      %222 = sbr.rel (0) target = $region89
    $region88: #{multimodal_token_compressor.1} parent=1 // pred_region
      %223 = dma.done [#allocation11], 1024
    $region89: #{multimodal_token_compressor.1} parent=1 // pred_fallthru
      _
    // Predicated region
    $region90: #{multimodal_token_compressor.1} parent=1 // pred_check
      _
    $region91: #{multimodal_token_compressor.1} parent=1 // pred_check_branch
      %225 = sbr.rel (0) target = $region93
    $region92: #{multimodal_token_compressor.1} parent=1 // pred_region
      %226 = dma.done [#allocation14], 16
    $region93: #{multimodal_token_compressor.1} parent=1 // pred_fallthru
      _
    // Predicated region
    $region94: #{multimodal_token_compressor.1} parent=1 // pred_check
      _
    $region95: #{multimodal_token_compressor.1} parent=1 // pred_check_branch
      %228 = sbr.rel (0) target = $region97
    $region96: #{multimodal_token_compressor.1} parent=1 // pred_region
      %229 = dma.done [#allocation14], 1024
    $region97: #{multimodal_token_compressor.1} parent=1 // pred_fallthru
      _
    // Predicated region
    $region98: #{multimodal_token_compressor.1} parent=1 // pred_check
      _
    $region99: #{multimodal_token_compressor.1} parent=1 // pred_check_branch
      %231 = sbr.rel (0) target = $region101
    $region100: #{multimodal_token_compressor.1} parent=1 // pred_region
      %232 = dma.done [#allocation17], 16
    $region101: #{multimodal_token_compressor.1} parent=1 // pred_fallthru
      _
    // Predicated region
    $region102: #{multimodal_token_compressor.1} parent=1 // pred_check
      _
    $region103: #{multimodal_token_compressor.1} parent=1 // pred_check_branch
      %234 = sbr.rel (0) target = $region105
    $region104: #{multimodal_token_compressor.1} parent=1 // pred_region
      %235 = dma.done [#allocation17], 1024
    $region105: #{multimodal_token_compressor.1} parent=1 // pred_fallthru
      _
    // Predicated region
    $region106: #{multimodal_token_compressor.1} parent=1 // pred_check
      _
    $region107: #{multimodal_token_compressor.1} parent=1 // pred_check_branch
      %237 = sbr.rel (0) target = $region109
    $region108: #{multimodal_token_compressor.1} parent=1 // pred_region
      %238 = dma.done [#allocation20], 16
    $region109: #{multimodal_token_compressor.1} parent=1 // pred_fallthru
      _
    // Predicated region
    $region110: #{multimodal_token_compressor.1} parent=1 // pred_check
      _
    $region111: #{multimodal_token_compressor.1} parent=1 // pred_check_branch
      %240 = sbr.rel (0) target = $region113
    $region112: #{multimodal_token_compressor.1} parent=1 // pred_region
      %241 = dma.done [#allocation20], 1024
    $region113: #{multimodal_token_compressor.1} parent=1 // pred_fallthru
      _
    // Predicated region
    $region114: #{multimodal_token_compressor.1} parent=1 // pred_check
      _
    $region115: #{multimodal_token_compressor.1} parent=1 // pred_check_branch
      %243 = sbr.rel (0) target = $region117
    $region116: #{multimodal_token_compressor.1} parent=1 // pred_region
      %244 = dma.done [#allocation23], 1024
    $region117: #{multimodal_token_compressor.1} parent=1 // pred_fallthru
      _
    // Predicated region
    $region118: #{multimodal_token_compressor.1} parent=1 // pred_check
      _
    $region119: #{multimodal_token_compressor.1} parent=1 // pred_check_branch
      %246 = sbr.rel (0) target = $region121
    $region120: #{multimodal_token_compressor.1} parent=1 // pred_region
      %247 = dma.done [#allocation23], 4096
    $region121: #{multimodal_token_compressor.1} parent=1 // pred_fallthru
      _
    // Predicated region
    $region122: #{multimodal_token_compressor.1} parent=1 // pred_check
      _
    $region123: #{multimodal_token_compressor.1} parent=1 // pred_check_branch
      %249 = sbr.rel (0) target = $region125
    $region124: #{multimodal_token_compressor.1} parent=1 // pred_region
      %250 = dma.done [#allocation26], 64
    $region125: #{multimodal_token_compressor.1} parent=1 // pred_fallthru
      _
    // Predicated region
    $region126: #{multimodal_token_compressor.1} parent=1 // pred_check
      _
    $region127: #{multimodal_token_compressor.1} parent=1 // pred_check_branch
      %252 = sbr.rel (0) target = $region129
    $region128: #{multimodal_token_compressor.1} parent=1 // pred_region
      %253 = dma.done [#allocation26], 64
    $region129: #{multimodal_token_compressor.1} parent=1 // pred_fallthru
      _
    %v255 = vld [vmem:[#allocation4] sm:$0xf]
    %v256 = vld [vmem:[#allocation4 + $0x4] sm:$0xf]
    %v257 = vld [vmem:[#allocation4 + $0x8] sm:$0xf]
    %v258 = vld [vmem:[#allocation4 + $0xc] sm:$0xf]
    %v259 = vld [vmem:[#allocation4 + $0x10] sm:$0xf]
    %v260 = vld [vmem:[#allocation4 + $0x14] sm:$0xf]
    %v261 = vld [vmem:[#allocation4 + $0x18] sm:$0xf]
    %v262 = vld [vmem:[#allocation4 + $0x1c] sm:$0xf]
    %v263 = vld [vmem:[#allocation9] sm:$0x1]
    %v264 = vld [vmem:[#allocation9 + $0x1] sm:$0x1]
    %v265 = vld [vmem:[#allocation9 + $0x2] sm:$0x1]
    %v266 = vld [vmem:[#allocation9 + $0x3] sm:$0x1]
    %vm267 = vcmp.gt.f32.partialorder %v263, 0.5
    %vm268 = vcmp.gt.f32.partialorder %v264, 0.5
    %vm269 = vcmp.gt.f32.partialorder %v265, 0.5
    %vm270 = vcmp.gt.f32.partialorder %v266, 0.5
    %v271 = vld [vmem:[#allocation12] sm:$0xf]
    %v272 = vld [vmem:[#allocation12 + $0x4] sm:$0xf]
    %v273 = vld [vmem:[#allocation12 + $0x8] sm:$0xf]
    %v274 = vld [vmem:[#allocation12 + $0xc] sm:$0xf]
    %v275 = vld [vmem:[#allocation12 + $0x10] sm:$0xf]
    %v276 = vld [vmem:[#allocation12 + $0x14] sm:$0xf]
    %v277 = vld [vmem:[#allocation12 + $0x18] sm:$0xf]
    %v278 = vld [vmem:[#allocation12 + $0x1c] sm:$0xf]
    %v279 = vld [vmem:[#allocation12 + $0x20] sm:$0xf]
    %v280 = vld [vmem:[#allocation12 + $0x24] sm:$0xf]
    %v281 = vld [vmem:[#allocation12 + $0x28] sm:$0xf]
    %v282 = vld [vmem:[#allocation12 + $0x2c] sm:$0xf]
    %v283 = vld [vmem:[#allocation12 + $0x30] sm:$0xf]
    %v284 = vld [vmem:[#allocation12 + $0x34] sm:$0xf]
    %v285 = vld [vmem:[#allocation12 + $0x38] sm:$0xf]
    %v286 = vld [vmem:[#allocation12 + $0x3c] sm:$0xf]
    %v287 = vld [vmem:[#allocation13] sm:$0x1]
    %v289 = vlaneseq
    %v290 = vshrl.u32 %v289, 7
    %v291 = vsub.s32 0, %v290
    %v292 = vrot.slane %v287, %v291
    %v302 = vunpack.c.l.b16 %v255
    %v303 = vunpack.c.l.b16 %v256
    %v304 = vunpack.c.l.b16 %v257
    %v305 = vunpack.c.l.b16 %v258
    %v306 = vunpack.c.l.b16 %v259
    %v307 = vunpack.c.l.b16 %v260
    %v308 = vunpack.c.l.b16 %v261
    %v309 = vunpack.c.l.b16 %v262
    %v310 = vpack.c.b16 %v303, %v302
    %v311 = vpack.c.b16 %v305, %v304
    %v312 = vpack.c.b16 %v307, %v306
    %v313 = vpack.c.b16 %v309, %v308
    %v334 = vunpack.c.l.b16 %v271
    %v335 = vunpack.c.l.b16 %v272
    %v336 = vunpack.c.l.b16 %v273
    %v337 = vunpack.c.l.b16 %v274
    %v338 = vunpack.c.l.b16 %v275
    %v339 = vunpack.c.l.b16 %v276
    %v340 = vunpack.c.l.b16 %v277
    %v341 = vunpack.c.l.b16 %v278
    %v342 = vunpack.c.l.b16 %v279
    %v343 = vunpack.c.l.b16 %v280
    %v344 = vunpack.c.l.b16 %v281
    %v345 = vunpack.c.l.b16 %v282
    %v346 = vunpack.c.l.b16 %v283
    %v347 = vunpack.c.l.b16 %v284
    %v348 = vunpack.c.l.b16 %v285
    %v349 = vunpack.c.l.b16 %v286
    %v350 = vpack.c.b16 %v335, %v334
    %v351 = vpack.c.b16 %v337, %v336
    %v352 = vpack.c.b16 %v339, %v338
    %v353 = vpack.c.b16 %v341, %v340
    %v354 = vpack.c.b16 %v343, %v342
    %v355 = vpack.c.b16 %v345, %v344
    %v356 = vpack.c.b16 %v347, %v346
    %v357 = vpack.c.b16 %v349, %v348
    %366 = vmatprep.subr.bf16.mxu0 0
    %367 = vmatpush1.bf16.msra.mxu0 %v350
    %368 = vmatprep.subr.bf16.mxu0 0
    %369 = vmatpush1.bf16.msra.mxu0 %v351
    %370 = vmatprep.subr.bf16.mxu0 0
    %371 = vmatpush1.bf16.msra.mxu0 %v352
    %372 = vmatprep.subr.bf16.mxu0 0
    %373 = vmatpush1.bf16.msra.mxu0 %v353
    %374 = vmatprep.subr.bf16.mxu0 0
    %375 = vmatpush1.bf16.msra.mxu0 %v354
    %376 = vmatprep.subr.bf16.mxu0 0
    %377 = vmatpush1.bf16.msra.mxu0 %v355
    %378 = vmatprep.subr.bf16.mxu0 0
    %379 = vmatpush1.bf16.msra.mxu0 %v356
    %380 = vmatprep.subr.bf16.mxu0 0
    %381 = vmatpush1.bf16.msra.mxu0 %v357
    %382 = vmatprep.subr.bf16.mxu0 0
    %383 = vmatpush1.bf16.msra.mxu0 0
    %384 = vmatprep.subr.bf16.mxu0 0
    %385 = vmatpush1.bf16.msra.mxu0 0
    %386 = vmatprep.subr.bf16.mxu0 0
    %387 = vmatpush1.bf16.msra.mxu0 0
    %388 = vmatprep.subr.bf16.mxu0 0
    %389 = vmatpush1.bf16.msra.mxu0 0
    %390 = vmatprep.subr.bf16.mxu0 0
    %391 = vmatpush1.bf16.msra.mxu0 0
    %392 = vmatprep.subr.bf16.mxu0 0
    %393 = vmatpush1.bf16.msra.mxu0 0
    %394 = vmatprep.subr.bf16.mxu0 0
    %395 = vmatpush1.bf16.msra.mxu0 0
    %396 = vmatprep.subr.bf16.mxu0 0
    %397 = vmatpush1.bf16.msra.mxu0 0
    %398 = vmatprep.mubr.bf16.mxu0 0
    %399 = vmatmul.mubr.bf16.gmra.mrb[0].mxu0 %v310
    %v400 = vpop.f32.mrb[0].mxu0
    %v401 = vadd.f32 %v292, %v400
    %v402 = vpop.f32.mrb[0].mxu0
    %v403 = vpop.f32.mrb[0].mxu0
    %v404 = vadd.f32 %v292, %v403
    %v405 = vpop.f32.mrb[0].mxu0
    %406 = vmatprep.mubr.bf16.mxu0 0
    %407 = vmatmul.mubr.bf16.gmra.mrb[0].mxu0 %v311
    %v408 = vpop.f32.mrb[0].mxu0
    %v409 = vadd.f32 %v292, %v408
    %v410 = vpop.f32.mrb[0].mxu0
    %v411 = vpop.f32.mrb[0].mxu0
    %v412 = vadd.f32 %v292, %v411
    %v413 = vpop.f32.mrb[0].mxu0
    %414 = vmatprep.mubr.bf16.mxu0 0
    %415 = vmatmul.mubr.bf16.gmra.mrb[0].mxu0 %v312
    %v416 = vpop.f32.mrb[0].mxu0
    %v417 = vadd.f32 %v292, %v416
    %v418 = vpop.f32.mrb[0].mxu0
    %v419 = vpop.f32.mrb[0].mxu0
    %v420 = vadd.f32 %v292, %v419
    %v421 = vpop.f32.mrb[0].mxu0
    %422 = vmatprep.mubr.bf16.mxu0 0
    %423 = vmatmul.mubr.bf16.gmra.mrb[0].mxu0 %v313
    %v424 = vpop.f32.mrb[0].mxu0
    %v425 = vadd.f32 %v292, %v424
    %v426 = vpop.f32.mrb[0].mxu0
    %v427 = vpop.f32.mrb[0].mxu0
    %v428 = vadd.f32 %v292, %v427
    %v429 = vpop.f32.mrb[0].mxu0
    %430 = vdwg.mxu0
    %v431 = vmul.f32 %v401, 0.5
    %v432 = vmul.f32 %v404, 0.5
    %v433 = vmul.f32 %v409, 0.5
    %v434 = vmul.f32 %v412, 0.5
    %v435 = vmul.f32 %v417, 0.5
    %v436 = vmul.f32 %v420, 0.5
    %v437 = vmul.f32 %v425, 0.5
    %v438 = vmul.f32 %v428, 0.5
    %v439 = vmul.f32 %v401, 0.044715
    %v440 = vmul.f32 %v404, 0.044715
    %v441 = vmul.f32 %v409, 0.044715
    %v442 = vmul.f32 %v412, 0.044715
    %v443 = vmul.f32 %v417, 0.044715
    %v444 = vmul.f32 %v420, 0.044715
    %v445 = vmul.f32 %v425, 0.044715
    %v446 = vmul.f32 %v428, 0.044715
    %v447 = vmul.f32 %v439, %v401
    %v448 = vmul.f32 %v440, %v404
    %v449 = vmul.f32 %v441, %v409
    %v450 = vmul.f32 %v442, %v412
    %v451 = vmul.f32 %v443, %v417
    %v452 = vmul.f32 %v444, %v420
    %v453 = vmul.f32 %v445, %v425
    %v454 = vmul.f32 %v446, %v428
    %v455 = vmul.f32 %v447, %v401
    %v456 = vmul.f32 %v448, %v404
    %v457 = vmul.f32 %v449, %v409
    %v458 = vmul.f32 %v450, %v412
    %v459 = vmul.f32 %v451, %v417
    %v460 = vmul.f32 %v452, %v420
    %v461 = vmul.f32 %v453, %v425
    %v462 = vmul.f32 %v454, %v428
    %v463 = vadd.f32 %v401, %v455
    %v464 = vadd.f32 %v404, %v456
    %v465 = vadd.f32 %v409, %v457
    %v466 = vadd.f32 %v412, %v458
    %v467 = vadd.f32 %v417, %v459
    %v468 = vadd.f32 %v420, %v460
    %v469 = vadd.f32 %v425, %v461
    %v470 = vadd.f32 %v428, %v462
    %v471 = vmul.f32 %v463, 0.7978846
    %v472 = vmul.f32 %v464, 0.7978846
    %v473 = vmul.f32 %v465, 0.7978846
    %v474 = vmul.f32 %v466, 0.7978846
    %v475 = vmul.f32 %v467, 0.7978846
    %v476 = vmul.f32 %v468, 0.7978846
    %v477 = vmul.f32 %v469, 0.7978846
    %v478 = vmul.f32 %v470, 0.7978846
    %v479 = vtanh.pop %v471
    %v480 = vtanh.pop %v472
    %v481 = vtanh.pop %v473
    %v482 = vtanh.pop %v474
    %v483 = vtanh.pop %v475
    %v484 = vtanh.pop %v476
    %v485 = vtanh.pop %v477
    %v486 = vtanh.pop %v478
    %v487 = vadd.f32 %v479, 1.0
    %v488 = vadd.f32 %v480, 1.0
    %v489 = vadd.f32 %v481, 1.0
    %v490 = vadd.f32 %v482, 1.0
    %v491 = vadd.f32 %v483, 1.0
    %v492 = vadd.f32 %v484, 1.0
    %v493 = vadd.f32 %v485, 1.0
    %v494 = vadd.f32 %v486, 1.0
    %v495 = vmul.f32 %v431, %v487
    %v496 = vmul.f32 %v432, %v488
    %v497 = vmul.f32 %v433, %v489
    %v498 = vmul.f32 %v434, %v490
    %v499 = vmul.f32 %v435, %v491
    %v500 = vmul.f32 %v436, %v492
    %v501 = vmul.f32 %v437, %v493
    %v502 = vmul.f32 %v438, %v494
    %v503 = vpack.c.bf16 %v496, %v495
    %v504 = vpack.c.bf16 %v498, %v497
    %v505 = vpack.c.bf16 %v500, %v499
    %v506 = vpack.c.bf16 %v502, %v501
    %v507 = vld [vmem:[#allocation15] sm:$0xf]
    %v508 = vld [vmem:[#allocation15 + $0x4] sm:$0xf]
    %v509 = vld [vmem:[#allocation15 + $0x8] sm:$0xf]
    %v510 = vld [vmem:[#allocation15 + $0xc] sm:$0xf]
    %v511 = vld [vmem:[#allocation15 + $0x10] sm:$0xf]
    %v512 = vld [vmem:[#allocation15 + $0x14] sm:$0xf]
    %v513 = vld [vmem:[#allocation15 + $0x18] sm:$0xf]
    %v514 = vld [vmem:[#allocation15 + $0x1c] sm:$0xf]
    %v515 = vld [vmem:[#allocation15 + $0x20] sm:$0xf]
    %v516 = vld [vmem:[#allocation15 + $0x24] sm:$0xf]
    %v517 = vld [vmem:[#allocation15 + $0x28] sm:$0xf]
    %v518 = vld [vmem:[#allocation15 + $0x2c] sm:$0xf]
    %v519 = vld [vmem:[#allocation15 + $0x30] sm:$0xf]
    %v520 = vld [vmem:[#allocation15 + $0x34] sm:$0xf]
    %v521 = vld [vmem:[#allocation15 + $0x38] sm:$0xf]
    %v522 = vld [vmem:[#allocation15 + $0x3c] sm:$0xf]
    %v523 = vld [vmem:[#allocation16] sm:$0x1]
    %v525 = vlaneseq
    %v526 = vshrl.u32 %v525, 7
    %v527 = vsub.s32 0, %v526
    %v528 = vrot.slane %v523, %v527
    %v546 = vunpack.c.l.b16 %v507
    %v547 = vunpack.c.l.b16 %v508
    %v548 = vunpack.c.l.b16 %v509
    %v549 = vunpack.c.l.b16 %v510
    %v550 = vunpack.c.l.b16 %v511
    %v551 = vunpack.c.l.b16 %v512
    %v552 = vunpack.c.l.b16 %v513
    %v553 = vunpack.c.l.b16 %v514
    %v554 = vunpack.c.l.b16 %v515
    %v555 = vunpack.c.l.b16 %v516
    %v556 = vunpack.c.l.b16 %v517
    %v557 = vunpack.c.l.b16 %v518
    %v558 = vunpack.c.l.b16 %v519
    %v559 = vunpack.c.l.b16 %v520
    %v560 = vunpack.c.l.b16 %v521
    %v561 = vunpack.c.l.b16 %v522
    %v562 = vpack.c.b16 %v547, %v546
    %v563 = vpack.c.b16 %v549, %v548
    %v564 = vpack.c.b16 %v551, %v550
    %v565 = vpack.c.b16 %v553, %v552
    %v566 = vpack.c.b16 %v555, %v554
    %v567 = vpack.c.b16 %v557, %v556
    %v568 = vpack.c.b16 %v559, %v558
    %v569 = vpack.c.b16 %v561, %v560
    %578 = vmatprep.subr.bf16.mxu0 0
    %579 = vmatpush1.bf16.msra.mxu0 %v562
    %580 = vmatprep.subr.bf16.mxu0 0
    %581 = vmatpush1.bf16.msra.mxu0 %v563
    %582 = vmatprep.subr.bf16.mxu0 0
    %583 = vmatpush1.bf16.msra.mxu0 %v564
    %584 = vmatprep.subr.bf16.mxu0 0
    %585 = vmatpush1.bf16.msra.mxu0 %v565
    %586 = vmatprep.subr.bf16.mxu0 0
    %587 = vmatpush1.bf16.msra.mxu0 %v566
    %588 = vmatprep.subr.bf16.mxu0 0
    %589 = vmatpush1.bf16.msra.mxu0 %v567
    %590 = vmatprep.subr.bf16.mxu0 0
    %591 = vmatpush1.bf16.msra.mxu0 %v568
    %592 = vmatprep.subr.bf16.mxu0 0
    %593 = vmatpush1.bf16.msra.mxu0 %v569
    %594 = vmatprep.subr.bf16.mxu0 0
    %595 = vmatpush1.bf16.msra.mxu0 0
    %596 = vmatprep.subr.bf16.mxu0 0
    %597 = vmatpush1.bf16.msra.mxu0 0
    %598 = vmatprep.subr.bf16.mxu0 0
    %599 = vmatpush1.bf16.msra.mxu0 0
    %600 = vmatprep.subr.bf16.mxu0 0
    %601 = vmatpush1.bf16.msra.mxu0 0
    %602 = vmatprep.subr.bf16.mxu0 0
    %603 = vmatpush1.bf16.msra.mxu0 0
    %604 = vmatprep.subr.bf16.mxu0 0
    %605 = vmatpush1.bf16.msra.mxu0 0
    %606 = vmatprep.subr.bf16.mxu0 0
    %607 = vmatpush1.bf16.msra.mxu0 0
    %608 = vmatprep.subr.bf16.mxu0 0
    %609 = vmatpush1.bf16.msra.mxu0 0
    %610 = vmatprep.mubr.bf16.mxu0 0
    %611 = vmatmul.mubr.bf16.gmra.mrb[0].mxu0 %v503
    %v612 = vpop.f32.mrb[0].mxu0
    %v613 = vadd.f32 %v528, %v612
    %v614 = vpop.f32.mrb[0].mxu0
    %v615 = vpop.f32.mrb[0].mxu0
    %v616 = vadd.f32 %v528, %v615
    %v617 = vpop.f32.mrb[0].mxu0
    %618 = vmatprep.mubr.bf16.mxu0 0
    %619 = vmatmul.mubr.bf16.gmra.mrb[0].mxu0 %v504
    %v620 = vpop.f32.mrb[0].mxu0
    %v621 = vadd.f32 %v528, %v620
    %v622 = vpop.f32.mrb[0].mxu0
    %v623 = vpop.f32.mrb[0].mxu0
    %v624 = vadd.f32 %v528, %v623
    %v625 = vpop.f32.mrb[0].mxu0
    %626 = vmatprep.mubr.bf16.mxu0 0
    %627 = vmatmul.mubr.bf16.gmra.mrb[0].mxu0 %v505
    %v628 = vpop.f32.mrb[0].mxu0
    %v629 = vadd.f32 %v528, %v628
    %v630 = vpop.f32.mrb[0].mxu0
    %v631 = vpop.f32.mrb[0].mxu0
    %v632 = vadd.f32 %v528, %v631
    %v633 = vpop.f32.mrb[0].mxu0
    %634 = vmatprep.mubr.bf16.mxu0 0
    %635 = vmatmul.mubr.bf16.gmra.mrb[0].mxu0 %v506
    %v636 = vpop.f32.mrb[0].mxu0
    %v637 = vadd.f32 %v528, %v636
    %v638 = vpop.f32.mrb[0].mxu0
    %v639 = vpop.f32.mrb[0].mxu0
    %v640 = vadd.f32 %v528, %v639
    %v641 = vpop.f32.mrb[0].mxu0
    %642 = vdwg.mxu0
    %v643 = vld [vmem:[#allocation7] sm:$0xf]
    %v644 = vld [vmem:[#allocation7 + $0x4] sm:$0xf]
    %v645 = vld [vmem:[#allocation7 + $0x8] sm:$0xf]
    %v646 = vld [vmem:[#allocation7 + $0xc] sm:$0xf]
    %v647 = vunpack.c.l.bf16 %v643
    %v648 = vunpack.c.l.bf16 %v644
    %v649 = vunpack.c.l.bf16 %v645
    %v650 = vunpack.c.l.bf16 %v646
    %v651 = vld [vmem:[#allocation10] sm:$0xff]
    %v652 = vld [vmem:[#allocation10 + $0x8] sm:$0xff]
    %v653 = vld [vmem:[#allocation10 + $0x10] sm:$0xff]
    %v654 = vld [vmem:[#allocation10 + $0x18] sm:$0xff]
    %656 = vset.pattern.permute.xlu0 0
    %657 = vperm.xlu0 %656, %v651
    %v658 = vpop.permute.xlu0 %657
    %661 = vset.pattern.permute.xlu0 0
    %662 = vperm.xlu0 %661, %v652
    %v663 = vpop.permute.xlu0 %662
    %666 = vset.pattern.permute.xlu0 0
    %667 = vperm.xlu0 %666, %v653
    %v668 = vpop.permute.xlu0 %667
    %671 = vset.pattern.permute.xlu0 0
    %672 = vperm.xlu0 %671, %v654
    %v673 = vpop.permute.xlu0 %672
    %v675 = vmul.f32 %v647, %v658
    %v676 = vmul.f32 %v648, %v663
    %v677 = vmul.f32 %v649, %v668
    %v678 = vmul.f32 %v650, %v673
    %v679 = vrot.slane %v675, 4
    %v680 = vadd.f32 %v675, %v679
    %v681 = vrot.slane %v680, 2
    %v682 = vadd.f32 %v680, %v681
    %v683 = vrot.slane %v682, 1
    %v684 = vadd.f32 %v682, %v683
    %v685 = vrot.slane %v676, 4
    %v686 = vadd.f32 %v676, %v685
    %v687 = vrot.slane %v686, 2
    %v688 = vadd.f32 %v686, %v687
    %v689 = vrot.slane %v688, 1
    %v690 = vadd.f32 %v688, %v689
    %v691 = vrot.slane %v677, 4
    %v692 = vadd.f32 %v677, %v691
    %v693 = vrot.slane %v692, 2
    %v694 = vadd.f32 %v692, %v693
    %v695 = vrot.slane %v694, 1
    %v696 = vadd.f32 %v694, %v695
    %v697 = vrot.slane %v678, 4
    %v698 = vadd.f32 %v678, %v697
    %v699 = vrot.slane %v698, 2
    %v700 = vadd.f32 %v698, %v699
    %v701 = vrot.slane %v700, 1
    %v702 = vadd.f32 %v700, %v701
    %vm703 = vcmask 7168
    %v704 = vsel %vm703, %v651, 0.0
    %v705 = vrot.slane %v704, 4
    %v706 = vadd.f32 %v704, %v705
    %v707 = vrot.slane %v706, 2
    %v708 = vadd.f32 %v706, %v707
    %v709 = vrot.slane %v708, 1
    %v710 = vadd.f32 %v708, %v709
    %v711 = vsel %vm703, %v652, 0.0
    %v712 = vrot.slane %v711, 4
    %v713 = vadd.f32 %v711, %v712
    %v714 = vrot.slane %v713, 2
    %v715 = vadd.f32 %v713, %v714
    %v716 = vrot.slane %v715, 1
    %v717 = vadd.f32 %v715, %v716
    %v718 = vsel %vm703, %v653, 0.0
    %v719 = vrot.slane %v718, 4
    %v720 = vadd.f32 %v718, %v719
    %v721 = vrot.slane %v720, 2
    %v722 = vadd.f32 %v720, %v721
    %v723 = vrot.slane %v722, 1
    %v724 = vadd.f32 %v722, %v723
    %v725 = vsel %vm703, %v654, 0.0
    %v726 = vrot.slane %v725, 4
    %v727 = vadd.f32 %v725, %v726
    %v728 = vrot.slane %v727, 2
    %v729 = vadd.f32 %v727, %v728
    %v730 = vrot.slane %v729, 1
    %v731 = vadd.f32 %v729, %v730
    %v732 = vmax.f32 %v710, 1e-06
    %v733 = vmax.f32 %v717, 1e-06
    %v734 = vmax.f32 %v724, 1e-06
    %v735 = vmax.f32 %v731, 1e-06
    %737 = vset.pattern.permute.xlu0 0
    %738 = vperm.xlu0 %737, %v732
    %v739 = vpop.permute.xlu0 %738
    %742 = vset.pattern.permute.xlu0 0
    %743 = vperm.xlu0 %742, %v733
    %v744 = vpop.permute.xlu0 %743
    %747 = vset.pattern.permute.xlu0 0
    %748 = vperm.xlu0 %747, %v734
    %v749 = vpop.permute.xlu0 %748
    %752 = vset.pattern.permute.xlu0 0
    %753 = vperm.xlu0 %752, %v735
    %v754 = vpop.permute.xlu0 %753
    %v756 = vrcp.pop %v739
    %v757 = vmul.f32 %v684, %v756
    %v758 = vrcp.pop %v744
    %v759 = vmul.f32 %v690, %v758
    %v760 = vrcp.pop %v749
    %v761 = vmul.f32 %v696, %v760
    %v762 = vrcp.pop %v754
    %v763 = vmul.f32 %v702, %v762
    %v764 = vpack.c.bf16 %v757, %v757
    %v765 = vpack.c.bf16 %v759, %v759
    %v766 = vpack.c.bf16 %v761, %v761
    %v767 = vpack.c.bf16 %v763, %v763
    %v768 = vld [vmem:[#allocation18] sm:$0xf]
    %v769 = vld [vmem:[#allocation18 + $0x4] sm:$0xf]
    %v770 = vld [vmem:[#allocation18 + $0x8] sm:$0xf]
    %v771 = vld [vmem:[#allocation18 + $0xc] sm:$0xf]
    %v772 = vld [vmem:[#allocation18 + $0x10] sm:$0xf]
    %v773 = vld [vmem:[#allocation18 + $0x14] sm:$0xf]
    %v774 = vld [vmem:[#allocation18 + $0x18] sm:$0xf]
    %v775 = vld [vmem:[#allocation18 + $0x1c] sm:$0xf]
    %v776 = vld [vmem:[#allocation18 + $0x20] sm:$0xf]
    %v777 = vld [vmem:[#allocation18 + $0x24] sm:$0xf]
    %v778 = vld [vmem:[#allocation18 + $0x28] sm:$0xf]
    %v779 = vld [vmem:[#allocation18 + $0x2c] sm:$0xf]
    %v780 = vld [vmem:[#allocation18 + $0x30] sm:$0xf]
    %v781 = vld [vmem:[#allocation18 + $0x34] sm:$0xf]
    %v782 = vld [vmem:[#allocation18 + $0x38] sm:$0xf]
    %v783 = vld [vmem:[#allocation18 + $0x3c] sm:$0xf]
    %v784 = vld [vmem:[#allocation19] sm:$0x1]
    %v786 = vlaneseq
    %v787 = vshrl.u32 %v786, 7
    %v788 = vsub.s32 0, %v787
    %v789 = vrot.slane %v784, %v788
    %v807 = vunpack.c.l.b16 %v768
    %v808 = vunpack.c.l.b16 %v769
    %v809 = vunpack.c.l.b16 %v770
    %v810 = vunpack.c.l.b16 %v771
    %v811 = vunpack.c.l.b16 %v772
    %v812 = vunpack.c.l.b16 %v773
    %v813 = vunpack.c.l.b16 %v774
    %v814 = vunpack.c.l.b16 %v775
    %v815 = vunpack.c.l.b16 %v776
    %v816 = vunpack.c.l.b16 %v777
    %v817 = vunpack.c.l.b16 %v778
    %v818 = vunpack.c.l.b16 %v779
    %v819 = vunpack.c.l.b16 %v780
    %v820 = vunpack.c.l.b16 %v781
    %v821 = vunpack.c.l.b16 %v782
    %v822 = vunpack.c.l.b16 %v783
    %v823 = vpack.c.b16 %v808, %v807
    %v824 = vpack.c.b16 %v810, %v809
    %v825 = vpack.c.b16 %v812, %v811
    %v826 = vpack.c.b16 %v814, %v813
    %v827 = vpack.c.b16 %v816, %v815
    %v828 = vpack.c.b16 %v818, %v817
    %v829 = vpack.c.b16 %v820, %v819
    %v830 = vpack.c.b16 %v822, %v821
    %839 = vmatprep.subr.bf16.mxu0 0
    %840 = vmatpush1.bf16.msra.mxu0 %v823
    %841 = vmatprep.subr.bf16.mxu0 0
    %842 = vmatpush1.bf16.msra.mxu0 %v824
    %843 = vmatprep.subr.bf16.mxu0 0
    %844 = vmatpush1.bf16.msra.mxu0 %v825
    %845 = vmatprep.subr.bf16.mxu0 0
    %846 = vmatpush1.bf16.msra.mxu0 %v826
    %847 = vmatprep.subr.bf16.mxu0 0
    %848 = vmatpush1.bf16.msra.mxu0 %v827
    %849 = vmatprep.subr.bf16.mxu0 0
    %850 = vmatpush1.bf16.msra.mxu0 %v828
    %851 = vmatprep.subr.bf16.mxu0 0
    %852 = vmatpush1.bf16.msra.mxu0 %v829
    %853 = vmatprep.subr.bf16.mxu0 0
    %854 = vmatpush1.bf16.msra.mxu0 %v830
    %855 = vmatprep.subr.bf16.mxu0 0
    %856 = vmatpush1.bf16.msra.mxu0 0
    %857 = vmatprep.subr.bf16.mxu0 0
    %858 = vmatpush1.bf16.msra.mxu0 0
    %859 = vmatprep.subr.bf16.mxu0 0
    %860 = vmatpush1.bf16.msra.mxu0 0
    %861 = vmatprep.subr.bf16.mxu0 0
    %862 = vmatpush1.bf16.msra.mxu0 0
    %863 = vmatprep.subr.bf16.mxu0 0
    %864 = vmatpush1.bf16.msra.mxu0 0
    %865 = vmatprep.subr.bf16.mxu0 0
    %866 = vmatpush1.bf16.msra.mxu0 0
    %867 = vmatprep.subr.bf16.mxu0 0
    %868 = vmatpush1.bf16.msra.mxu0 0
    %869 = vmatprep.subr.bf16.mxu0 0
    %870 = vmatpush1.bf16.msra.mxu0 0
    %871 = vmatprep.mubr.bf16.mxu0 0
    %872 = vmatmul.mubr.bf16.gmra.mrb[0].mxu0 %v310
    %v873 = vpop.f32.mrb[0].mxu0
    %v874 = vadd.f32 %v789, %v873
    %v875 = vpop.f32.mrb[0].mxu0
    %v876 = vpop.f32.mrb[0].mxu0
    %v877 = vadd.f32 %v789, %v876
    %v878 = vpop.f32.mrb[0].mxu0
    %879 = vmatprep.mubr.bf16.mxu0 0
    %880 = vmatmul.mubr.bf16.gmra.mrb[0].mxu0 %v311
    %v881 = vpop.f32.mrb[0].mxu0
    %v882 = vadd.f32 %v789, %v881
    %v883 = vpop.f32.mrb[0].mxu0
    %v884 = vpop.f32.mrb[0].mxu0
    %v885 = vadd.f32 %v789, %v884
    %v886 = vpop.f32.mrb[0].mxu0
    %887 = vmatprep.mubr.bf16.mxu0 0
    %888 = vmatmul.mubr.bf16.gmra.mrb[0].mxu0 %v312
    %v889 = vpop.f32.mrb[0].mxu0
    %v890 = vadd.f32 %v789, %v889
    %v891 = vpop.f32.mrb[0].mxu0
    %v892 = vpop.f32.mrb[0].mxu0
    %v893 = vadd.f32 %v789, %v892
    %v894 = vpop.f32.mrb[0].mxu0
    %895 = vmatprep.mubr.bf16.mxu0 0
    %896 = vmatmul.mubr.bf16.gmra.mrb[0].mxu0 %v313
    %v897 = vpop.f32.mrb[0].mxu0
    %v898 = vadd.f32 %v789, %v897
    %v899 = vpop.f32.mrb[0].mxu0
    %v900 = vpop.f32.mrb[0].mxu0
    %v901 = vadd.f32 %v789, %v900
    %v902 = vpop.f32.mrb[0].mxu0
    %903 = vdwg.mxu0
    %v904 = vld [vmem:[#allocation21] sm:$0xf]
    %v905 = vld [vmem:[#allocation21 + $0x4] sm:$0xf]
    %v906 = vld [vmem:[#allocation21 + $0x8] sm:$0xf]
    %v907 = vld [vmem:[#allocation21 + $0xc] sm:$0xf]
    %v908 = vld [vmem:[#allocation21 + $0x10] sm:$0xf]
    %v909 = vld [vmem:[#allocation21 + $0x14] sm:$0xf]
    %v910 = vld [vmem:[#allocation21 + $0x18] sm:$0xf]
    %v911 = vld [vmem:[#allocation21 + $0x1c] sm:$0xf]
    %v912 = vld [vmem:[#allocation21 + $0x20] sm:$0xf]
    %v913 = vld [vmem:[#allocation21 + $0x24] sm:$0xf]
    %v914 = vld [vmem:[#allocation21 + $0x28] sm:$0xf]
    %v915 = vld [vmem:[#allocation21 + $0x2c] sm:$0xf]
    %v916 = vld [vmem:[#allocation21 + $0x30] sm:$0xf]
    %v917 = vld [vmem:[#allocation21 + $0x34] sm:$0xf]
    %v918 = vld [vmem:[#allocation21 + $0x38] sm:$0xf]
    %v919 = vld [vmem:[#allocation21 + $0x3c] sm:$0xf]
    %v924 = vunpack.c.l.b16 %v764
    %v925 = vunpack.c.l.b16 %v765
    %v926 = vunpack.c.l.b16 %v766
    %v927 = vunpack.c.l.b16 %v767
    %vm928 = vcmask 1041409
    %v929 = vsel %vm928, %v925, %v924
    %vm930 = vcmask 1042434
    %v931 = vsel %vm930, %v926, %v929
    %vm932 = vcmask 1043459
    %v933 = vsel %vm932, %v927, %v931
    %v934 = vpack.c.b16 %v933, %v933
    %v952 = vunpack.c.l.b16 %v904
    %v953 = vunpack.c.l.b16 %v905
    %v954 = vunpack.c.l.b16 %v906
    %v955 = vunpack.c.l.b16 %v907
    %v956 = vunpack.c.l.b16 %v908
    %v957 = vunpack.c.l.b16 %v909
    %v958 = vunpack.c.l.b16 %v910
    %v959 = vunpack.c.l.b16 %v911
    %v960 = vunpack.c.l.b16 %v912
    %v961 = vunpack.c.l.b16 %v913
    %v962 = vunpack.c.l.b16 %v914
    %v963 = vunpack.c.l.b16 %v915
    %v964 = vunpack.c.l.b16 %v916
    %v965 = vunpack.c.l.b16 %v917
    %v966 = vunpack.c.l.b16 %v918
    %v967 = vunpack.c.l.b16 %v919
    %v968 = vpack.c.b16 %v953, %v952
    %v969 = vpack.c.b16 %v955, %v954
    %v970 = vpack.c.b16 %v957, %v956
    %v971 = vpack.c.b16 %v959, %v958
    %v972 = vpack.c.b16 %v961, %v960
    %v973 = vpack.c.b16 %v963, %v962
    %v974 = vpack.c.b16 %v965, %v964
    %v975 = vpack.c.b16 %v967, %v966
    %984 = vmatprep.subr.bf16.mxu0 0
    %985 = vmatpush1.bf16.msra.mxu0 %v968
    %986 = vmatprep.subr.bf16.mxu0 0
    %987 = vmatpush1.bf16.msra.mxu0 %v969
    %988 = vmatprep.subr.bf16.mxu0 0
    %989 = vmatpush1.bf16.msra.mxu0 %v970
    %990 = vmatprep.subr.bf16.mxu0 0
    %991 = vmatpush1.bf16.msra.mxu0 %v971
    %992 = vmatprep.subr.bf16.mxu0 0
    %993 = vmatpush1.bf16.msra.mxu0 %v972
    %994 = vmatprep.subr.bf16.mxu0 0
    %995 = vmatpush1.bf16.msra.mxu0 %v973
    %996 = vmatprep.subr.bf16.mxu0 0
    %997 = vmatpush1.bf16.msra.mxu0 %v974
    %998 = vmatprep.subr.bf16.mxu0 0
    %999 = vmatpush1.bf16.msra.mxu0 %v975
    %1000 = vmatprep.subr.bf16.mxu0 0
    %1001 = vmatpush1.bf16.msra.mxu0 0
    %1002 = vmatprep.subr.bf16.mxu0 0
    %1003 = vmatpush1.bf16.msra.mxu0 0
    %1004 = vmatprep.subr.bf16.mxu0 0
    %1005 = vmatpush1.bf16.msra.mxu0 0
    %1006 = vmatprep.subr.bf16.mxu0 0
    %1007 = vmatpush1.bf16.msra.mxu0 0
    %1008 = vmatprep.subr.bf16.mxu0 0
    %1009 = vmatpush1.bf16.msra.mxu0 0
    %1010 = vmatprep.subr.bf16.mxu0 0
    %1011 = vmatpush1.bf16.msra.mxu0 0
    %1012 = vmatprep.subr.bf16.mxu0 0
    %1013 = vmatpush1.bf16.msra.mxu0 0
    %1014 = vmatprep.subr.bf16.mxu0 0
    %1015 = vmatpush1.bf16.msra.mxu0 0
    %1016 = vmatprep.mubr.bf16.mxu0 0
    %1017 = vmatmul.mubr.bf16.gmra.mrb[0].mxu0 %v934
    %v1018 = vpop.f32.mrb[0].mxu0
    %v1019 = vadd.f32 0.0, %v1018
    %v1020 = vpop.f32.mrb[0].mxu0
    %v1021 = vpop.f32.mrb[0].mxu0
    %v1022 = vpop.f32.mrb[0].mxu0
    %1023 = vdwg.mxu0
    %v1026 = vunpack.c.l.s4 1966171168
    %v1027 = vunpack.c.0.s8 %v1026
    %v1028 = vlaneseq
    %v1029 = vshrl.u32 %v1028, 7
    %v1030 = vsub.s32 %v1027, %v1029
    %v1031 = vrot.slane %v1019, %v1030
    %v1032 = vcombine.high %v1031, %v1031
    %v1034 = vunpack.c.l.s4 1966171168
    %v1035 = vunpack.c.0.s8 %v1034
    %v1036 = vlaneseq
    %v1037 = vshrl.u32 %v1036, 7
    %v1038 = vsub.s32 %v1035, %v1037
    %v1039 = vrot.slane %v1031, %v1038
    %v1041 = vunpack.c.l.s4 1966171168
    %v1042 = vunpack.c.0.s8 %v1041
    %v1043 = vlaneseq
    %v1044 = vshrl.u32 %v1043, 7
    %v1045 = vsub.s32 %v1042, %v1044
    %v1046 = vrot.slane %v1032, %v1045
    %v1047 = vcombine.high %v1039, %v1039
    %v1048 = vcombine.high %v1046, %v1046
    %v1049 = vlaneseq
    %v1050 = vshrl.u32 %v1049, 7
    %v1051 = vsub.s32 0, %v1050
    %v1052 = vrot.slane %v1039, %v1051
    %v1053 = vlaneseq
    %v1054 = vshrl.u32 %v1053, 7
    %v1055 = vsub.s32 0, %v1054
    %v1056 = vrot.slane %v1046, %v1055
    %v1057 = vlaneseq
    %v1058 = vshrl.u32 %v1057, 7
    %v1059 = vsub.s32 0, %v1058
    %v1060 = vrot.slane %v1047, %v1059
    %v1061 = vlaneseq
    %v1062 = vshrl.u32 %v1061, 7
    %v1063 = vsub.s32 0, %v1062
    %v1064 = vrot.slane %v1048, %v1063
    %v1069 = vadd.f32 %v874, %v1052
    %v1070 = vadd.f32 %v877, %v1052
    %v1071 = vadd.f32 %v882, %v1056
    %v1072 = vadd.f32 %v885, %v1056
    %v1073 = vadd.f32 %v890, %v1060
    %v1074 = vadd.f32 %v893, %v1060
    %v1075 = vadd.f32 %v898, %v1064
    %v1076 = vadd.f32 %v901, %v1064
    %v1077 = vtanh.pop %v1069
    %v1078 = vtanh.pop %v1070
    %v1079 = vtanh.pop %v1071
    %v1080 = vtanh.pop %v1072
    %v1081 = vtanh.pop %v1073
    %v1082 = vtanh.pop %v1074
    %v1083 = vtanh.pop %v1075
    %v1084 = vtanh.pop %v1076
    %v1085 = vpack.c.bf16 %v1078, %v1077
    %v1086 = vpack.c.bf16 %v1080, %v1079
    %v1087 = vpack.c.bf16 %v1082, %v1081
    %v1088 = vpack.c.bf16 %v1084, %v1083
    %v1089 = vld [vmem:[#allocation22] sm:$0xf]
    %v1090 = vld [vmem:[#allocation22 + $0x4] sm:$0xf]
    %v1091 = vld [vmem:[#allocation22 + $0x8] sm:$0xf]
    %v1092 = vld [vmem:[#allocation22 + $0xc] sm:$0xf]
    %v1093 = vld [vmem:[#allocation22 + $0x10] sm:$0xf]
    %v1094 = vld [vmem:[#allocation22 + $0x14] sm:$0xf]
    %v1095 = vld [vmem:[#allocation22 + $0x18] sm:$0xf]
    %v1096 = vld [vmem:[#allocation22 + $0x1c] sm:$0xf]
    %v1097 = vld [vmem:[#allocation22 + $0x20] sm:$0xf]
    %v1098 = vld [vmem:[#allocation22 + $0x24] sm:$0xf]
    %v1099 = vld [vmem:[#allocation22 + $0x28] sm:$0xf]
    %v1100 = vld [vmem:[#allocation22 + $0x2c] sm:$0xf]
    %v1101 = vld [vmem:[#allocation22 + $0x30] sm:$0xf]
    %v1102 = vld [vmem:[#allocation22 + $0x34] sm:$0xf]
    %v1103 = vld [vmem:[#allocation22 + $0x38] sm:$0xf]
    %v1104 = vld [vmem:[#allocation22 + $0x3c] sm:$0xf]
    %v1121 = vunpack.c.l.b16 %v1089
    %v1122 = vunpack.c.l.b16 %v1090
    %v1123 = vunpack.c.l.b16 %v1091
    %v1124 = vunpack.c.l.b16 %v1092
    %v1125 = vunpack.c.l.b16 %v1093
    %v1126 = vunpack.c.l.b16 %v1094
    %v1127 = vunpack.c.l.b16 %v1095
    %v1128 = vunpack.c.l.b16 %v1096
    %v1129 = vunpack.c.l.b16 %v1097
    %v1130 = vunpack.c.l.b16 %v1098
    %v1131 = vunpack.c.l.b16 %v1099
    %v1132 = vunpack.c.l.b16 %v1100
    %v1133 = vunpack.c.l.b16 %v1101
    %v1134 = vunpack.c.l.b16 %v1102
    %v1135 = vunpack.c.l.b16 %v1103
    %v1136 = vunpack.c.l.b16 %v1104
    %v1137 = vpack.c.b16 %v1122, %v1121
    %v1138 = vpack.c.b16 %v1124, %v1123
    %v1139 = vpack.c.b16 %v1126, %v1125
    %v1140 = vpack.c.b16 %v1128, %v1127
    %v1141 = vpack.c.b16 %v1130, %v1129
    %v1142 = vpack.c.b16 %v1132, %v1131
    %v1143 = vpack.c.b16 %v1134, %v1133
    %v1144 = vpack.c.b16 %v1136, %v1135
    %1153 = vmatprep.subr.bf16.mxu0 0
    %1154 = vmatpush1.bf16.msra.mxu0 %v1137
    %1155 = vmatprep.subr.bf16.mxu0 0
    %1156 = vmatpush1.bf16.msra.mxu0 %v1138
    %1157 = vmatprep.subr.bf16.mxu0 0
    %1158 = vmatpush1.bf16.msra.mxu0 %v1139
    %1159 = vmatprep.subr.bf16.mxu0 0
    %1160 = vmatpush1.bf16.msra.mxu0 %v1140
    %1161 = vmatprep.subr.bf16.mxu0 0
    %1162 = vmatpush1.bf16.msra.mxu0 %v1141
    %1163 = vmatprep.subr.bf16.mxu0 0
    %1164 = vmatpush1.bf16.msra.mxu0 %v1142
    %1165 = vmatprep.subr.bf16.mxu0 0
    %1166 = vmatpush1.bf16.msra.mxu0 %v1143
    %1167 = vmatprep.subr.bf16.mxu0 0
    %1168 = vmatpush1.bf16.msra.mxu0 %v1144
    %1169 = vmatprep.subr.bf16.mxu0 0
    %1170 = vmatpush1.bf16.msra.mxu0 0
    %1171 = vmatprep.subr.bf16.mxu0 0
    %1172 = vmatpush1.bf16.msra.mxu0 0
    %1173 = vmatprep.subr.bf16.mxu0 0
    %1174 = vmatpush1.bf16.msra.mxu0 0
    %1175 = vmatprep.subr.bf16.mxu0 0
    %1176 = vmatpush1.bf16.msra.mxu0 0
    %1177 = vmatprep.subr.bf16.mxu0 0
    %1178 = vmatpush1.bf16.msra.mxu0 0
    %1179 = vmatprep.subr.bf16.mxu0 0
    %1180 = vmatpush1.bf16.msra.mxu0 0
    %1181 = vmatprep.subr.bf16.mxu0 0
    %1182 = vmatpush1.bf16.msra.mxu0 0
    %1183 = vmatprep.subr.bf16.mxu0 0
    %1184 = vmatpush1.bf16.msra.mxu0 0
    %1185 = vmatprep.mubr.bf16.mxu0 0
    %1186 = vmatmul.mubr.bf16.gmra.mrb[0].mxu0 %v1085
    %v1187 = vpop.f32.mrb[0].mxu0
    %v1188 = vadd.f32 0.0, %v1187
    %v1189 = vpop.f32.mrb[0].mxu0
    %v1190 = vpop.f32.mrb[0].mxu0
    %v1191 = vadd.f32 0.0, %v1190
    %v1192 = vpop.f32.mrb[0].mxu0
    %1193 = vmatprep.mubr.bf16.mxu0 0
    %1194 = vmatmul.mubr.bf16.gmra.mrb[0].mxu0 %v1086
    %v1195 = vpop.f32.mrb[0].mxu0
    %v1196 = vadd.f32 0.0, %v1195
    %v1197 = vpop.f32.mrb[0].mxu0
    %v1198 = vpop.f32.mrb[0].mxu0
    %v1199 = vadd.f32 0.0, %v1198
    %v1200 = vpop.f32.mrb[0].mxu0
    %1201 = vmatprep.mubr.bf16.mxu0 0
    %1202 = vmatmul.mubr.bf16.gmra.mrb[0].mxu0 %v1087
    %v1203 = vpop.f32.mrb[0].mxu0
    %v1204 = vadd.f32 0.0, %v1203
    %v1205 = vpop.f32.mrb[0].mxu0
    %v1206 = vpop.f32.mrb[0].mxu0
    %v1207 = vadd.f32 0.0, %v1206
    %v1208 = vpop.f32.mrb[0].mxu0
    %1209 = vmatprep.mubr.bf16.mxu0 0
    %1210 = vmatmul.mubr.bf16.gmra.mrb[0].mxu0 %v1088
    %v1211 = vpop.f32.mrb[0].mxu0
    %v1212 = vadd.f32 0.0, %v1211
    %v1213 = vpop.f32.mrb[0].mxu0
    %v1214 = vpop.f32.mrb[0].mxu0
    %v1215 = vadd.f32 0.0, %v1214
    %v1216 = vpop.f32.mrb[0].mxu0
    %1217 = vdwg.mxu0
    %1226 = vrot.lane.b32.xlu0 %v1188, 8
    %v1227 = vpop.permute.xlu0 %1226
    %1228 = vrot.lane.b32.xlu0 %v1191, 8
    %v1229 = vpop.permute.xlu0 %1228
    %1230 = vrot.lane.b32.xlu0 %v1196, 8
    %v1231 = vpop.permute.xlu0 %1230
    %1232 = vrot.lane.b32.xlu0 %v1199, 8
    %v1233 = vpop.permute.xlu0 %1232
    %1234 = vrot.lane.b32.xlu0 %v1204, 8
    %v1235 = vpop.permute.xlu0 %1234
    %1236 = vrot.lane.b32.xlu0 %v1207, 8
    %v1237 = vpop.permute.xlu0 %1236
    %1238 = vrot.lane.b32.xlu0 %v1212, 8
    %v1239 = vpop.permute.xlu0 %1238
    %1240 = vrot.lane.b32.xlu0 %v1215, 8
    %v1241 = vpop.permute.xlu0 %1240
    %vm1250 = vcmask 64512
    %v1251 = vsel %vm1250, %v613, %v1227
    %v1252 = vsel %vm1250, %v616, %v1229
    %v1253 = vsel %vm1250, %v621, %v1231
    %v1254 = vsel %vm1250, %v624, %v1233
    %v1255 = vsel %vm1250, %v629, %v1235
    %v1256 = vsel %vm1250, %v632, %v1237
    %v1257 = vsel %vm1250, %v637, %v1239
    %v1258 = vsel %vm1250, %v640, %v1241
    %1259 = vxpose.xlu0.b32.start [1/16] %v1251, 128
    %1260 = vxpose.xlu0.b32.cont [2/16] %v1252, 128
    %1261 = vxpose.xlu0.b32.cont [3/16] 0.0, 128
    %1262 = vxpose.xlu0.b32.cont [4/16] 0.0, 128
    %1263 = vxpose.xlu0.b32.cont [5/16] 0.0, 128
    %1264 = vxpose.xlu0.b32.cont [6/16] 0.0, 128
    %1265 = vxpose.xlu0.b32.cont [7/16] 0.0, 128
    %1266 = vxpose.xlu0.b32.cont [8/16] 0.0, 128
    %1267 = vxpose.xlu0.b32.cont [9/16] 0.0, 128
    %1268 = vxpose.xlu0.b32.cont [10/16] 0.0, 128
    %1269 = vxpose.xlu0.b32.cont [11/16] 0.0, 128
    %1270 = vxpose.xlu0.b32.cont [12/16] 0.0, 128
    %1271 = vxpose.xlu0.b32.cont [13/16] 0.0, 128
    %1272 = vxpose.xlu0.b32.cont [14/16] 0.0, 128
    %1273 = vxpose.xlu0.b32.cont [15/16] 0.0, 128
    %1274 = vxpose.xlu0.b32.end [16/16] 0.0, 128
    %v1275 = vpop.trf.xlu0
    %v1276 = vpop.trf.xlu0
    %v1277 = vpop.trf.xlu0
    %v1278 = vpop.trf.xlu0
    %v1279 = vpop.trf.xlu0
    %v1280 = vpop.trf.xlu0
    %v1281 = vpop.trf.xlu0
    %v1282 = vpop.trf.xlu0
    %v1283 = vpop.trf.xlu0
    %v1284 = vpop.trf.xlu0
    %v1285 = vpop.trf.xlu0
    %v1286 = vpop.trf.xlu0
    %v1287 = vpop.trf.xlu0
    %v1288 = vpop.trf.xlu0
    %v1289 = vpop.trf.xlu0
    %v1290 = vpop.trf.xlu0
    %1291 = vxpose.xlu0.b32.start [1/16] %v1253, 128
    %1292 = vxpose.xlu0.b32.cont [2/16] %v1254, 128
    %1293 = vxpose.xlu0.b32.cont [3/16] 0.0, 128
    %1294 = vxpose.xlu0.b32.cont [4/16] 0.0, 128
    %1295 = vxpose.xlu0.b32.cont [5/16] 0.0, 128
    %1296 = vxpose.xlu0.b32.cont [6/16] 0.0, 128
    %1297 = vxpose.xlu0.b32.cont [7/16] 0.0, 128
    %1298 = vxpose.xlu0.b32.cont [8/16] 0.0, 128
    %1299 = vxpose.xlu0.b32.cont [9/16] 0.0, 128
    %1300 = vxpose.xlu0.b32.cont [10/16] 0.0, 128
    %1301 = vxpose.xlu0.b32.cont [11/16] 0.0, 128
    %1302 = vxpose.xlu0.b32.cont [12/16] 0.0, 128
    %1303 = vxpose.xlu0.b32.cont [13/16] 0.0, 128
    %1304 = vxpose.xlu0.b32.cont [14/16] 0.0, 128
    %1305 = vxpose.xlu0.b32.cont [15/16] 0.0, 128
    %1306 = vxpose.xlu0.b32.end [16/16] 0.0, 128
    %v1307 = vpop.trf.xlu0
    %v1308 = vpop.trf.xlu0
    %v1309 = vpop.trf.xlu0
    %v1310 = vpop.trf.xlu0
    %v1311 = vpop.trf.xlu0
    %v1312 = vpop.trf.xlu0
    %v1313 = vpop.trf.xlu0
    %v1314 = vpop.trf.xlu0
    %v1315 = vpop.trf.xlu0
    %v1316 = vpop.trf.xlu0
    %v1317 = vpop.trf.xlu0
    %v1318 = vpop.trf.xlu0
    %v1319 = vpop.trf.xlu0
    %v1320 = vpop.trf.xlu0
    %v1321 = vpop.trf.xlu0
    %v1322 = vpop.trf.xlu0
    %1323 = vxpose.xlu0.b32.start [1/16] %v1255, 128
    %1324 = vxpose.xlu0.b32.cont [2/16] %v1256, 128
    %1325 = vxpose.xlu0.b32.cont [3/16] 0.0, 128
    %1326 = vxpose.xlu0.b32.cont [4/16] 0.0, 128
    %1327 = vxpose.xlu0.b32.cont [5/16] 0.0, 128
    %1328 = vxpose.xlu0.b32.cont [6/16] 0.0, 128
    %1329 = vxpose.xlu0.b32.cont [7/16] 0.0, 128
    %1330 = vxpose.xlu0.b32.cont [8/16] 0.0, 128
    %1331 = vxpose.xlu0.b32.cont [9/16] 0.0, 128
    %1332 = vxpose.xlu0.b32.cont [10/16] 0.0, 128
    %1333 = vxpose.xlu0.b32.cont [11/16] 0.0, 128
    %1334 = vxpose.xlu0.b32.cont [12/16] 0.0, 128
    %1335 = vxpose.xlu0.b32.cont [13/16] 0.0, 128
    %1336 = vxpose.xlu0.b32.cont [14/16] 0.0, 128
    %1337 = vxpose.xlu0.b32.cont [15/16] 0.0, 128
    %1338 = vxpose.xlu0.b32.end [16/16] 0.0, 128
    %v1339 = vpop.trf.xlu0
    %v1340 = vpop.trf.xlu0
    %v1341 = vpop.trf.xlu0
    %v1342 = vpop.trf.xlu0
    %v1343 = vpop.trf.xlu0
    %v1344 = vpop.trf.xlu0
    %v1345 = vpop.trf.xlu0
    %v1346 = vpop.trf.xlu0
    %v1347 = vpop.trf.xlu0
    %v1348 = vpop.trf.xlu0
    %v1349 = vpop.trf.xlu0
    %v1350 = vpop.trf.xlu0
    %v1351 = vpop.trf.xlu0
    %v1352 = vpop.trf.xlu0
    %v1353 = vpop.trf.xlu0
    %v1354 = vpop.trf.xlu0
    %1355 = vxpose.xlu0.b32.start [1/16] %v1257, 128
    %1356 = vxpose.xlu0.b32.cont [2/16] %v1258, 128
    %1357 = vxpose.xlu0.b32.cont [3/16] 0.0, 128
    %1358 = vxpose.xlu0.b32.cont [4/16] 0.0, 128
    %1359 = vxpose.xlu0.b32.cont [5/16] 0.0, 128
    %1360 = vxpose.xlu0.b32.cont [6/16] 0.0, 128
    %1361 = vxpose.xlu0.b32.cont [7/16] 0.0, 128
    %1362 = vxpose.xlu0.b32.cont [8/16] 0.0, 128
    %1363 = vxpose.xlu0.b32.cont [9/16] 0.0, 128
    %1364 = vxpose.xlu0.b32.cont [10/16] 0.0, 128
    %1365 = vxpose.xlu0.b32.cont [11/16] 0.0, 128
    %1366 = vxpose.xlu0.b32.cont [12/16] 0.0, 128
    %1367 = vxpose.xlu0.b32.cont [13/16] 0.0, 128
    %1368 = vxpose.xlu0.b32.cont [14/16] 0.0, 128
    %1369 = vxpose.xlu0.b32.cont [15/16] 0.0, 128
    %1370 = vxpose.xlu0.b32.end [16/16] 0.0, 128
    %v1371 = vpop.trf.xlu0
    %v1372 = vpop.trf.xlu0
    %v1373 = vpop.trf.xlu0
    %v1374 = vpop.trf.xlu0
    %v1375 = vpop.trf.xlu0
    %v1376 = vpop.trf.xlu0
    %v1377 = vpop.trf.xlu0
    %v1378 = vpop.trf.xlu0
    %v1379 = vpop.trf.xlu0
    %v1380 = vpop.trf.xlu0
    %v1381 = vpop.trf.xlu0
    %v1382 = vpop.trf.xlu0
    %v1383 = vpop.trf.xlu0
    %v1384 = vpop.trf.xlu0
    %v1385 = vpop.trf.xlu0
    %v1386 = vpop.trf.xlu0
    %v1387 = vsel %vm267, 1, 0
    %v1388 = vsel %vm268, 1, 0
    %v1389 = vsel %vm269, 1, 0
    %v1390 = vsel %vm270, 1, 0
    %v1391 = vlaneseq
    %v1392 = vshrl.u32 %v1391, 7
    %v1393 = vsub.s32 0, %v1392
    %v1394 = vrot.slane %v1387, %v1393
    %v1395 = vlaneseq
    %v1396 = vshrl.u32 %v1395, 7
    %v1397 = vsub.s32 0, %v1396
    %v1398 = vrot.slane %v1388, %v1397
    %v1399 = vlaneseq
    %v1400 = vshrl.u32 %v1399, 7
    %v1401 = vsub.s32 0, %v1400
    %v1402 = vrot.slane %v1389, %v1401
    %v1403 = vlaneseq
    %v1404 = vshrl.u32 %v1403, 7
    %v1405 = vsub.s32 0, %v1404
    %v1406 = vrot.slane %v1390, %v1405
    %vm1407 = vcmp.eq.s32.totalorder %v1394, 1
    %vm1408 = vcmp.eq.s32.totalorder %v1398, 1
    %vm1409 = vcmp.eq.s32.totalorder %v1402, 1
    %vm1410 = vcmp.eq.s32.totalorder %v1406, 1
    %v1411 = vsel %vm1407, %v1275, -1e+09
    %v1412 = vsel %vm1407, %v1276, -1e+09
    %v1413 = vsel %vm1408, %v1307, -1e+09
    %v1414 = vsel %vm1408, %v1308, -1e+09
    %v1415 = vsel %vm1409, %v1339, -1e+09
    %v1416 = vsel %vm1409, %v1340, -1e+09
    %v1417 = vsel %vm1410, %v1371, -1e+09
    %v1418 = vsel %vm1410, %v1372, -1e+09
    %vm1419 = vcmask 130048
    %v1420 = vsel %vm1419, %v1411, -inf
    %1421 = vmax.xlane.f32.xlu0 %v1420
    %v1422 = vpop.xlane.xlu0 %1421
    %v1423 = vsel %vm1419, %v1412, -inf
    %1424 = vmax.xlane.f32.xlu0 %v1423
    %v1425 = vpop.xlane.xlu0 %1424
    %v1426 = vsel %vm1419, %v1413, -inf
    %1427 = vmax.xlane.f32.xlu0 %v1426
    %v1428 = vpop.xlane.xlu0 %1427
    %v1429 = vsel %vm1419, %v1414, -inf
    %1430 = vmax.xlane.f32.xlu0 %v1429
    %v1431 = vpop.xlane.xlu0 %1430
    %v1432 = vsel %vm1419, %v1415, -inf
    %1433 = vmax.xlane.f32.xlu0 %v1432
    %v1434 = vpop.xlane.xlu0 %1433
    %v1435 = vsel %vm1419, %v1416, -inf
    %1436 = vmax.xlane.f32.xlu0 %v1435
    %v1437 = vpop.xlane.xlu0 %1436
    %v1438 = vsel %vm1419, %v1417, -inf
    %1439 = vmax.xlane.f32.xlu0 %v1438
    %v1440 = vpop.xlane.xlu0 %1439
    %v1441 = vsel %vm1419, %v1418, -inf
    %1442 = vmax.xlane.f32.xlu0 %v1441
    %v1443 = vpop.xlane.xlu0 %1442
    %v1444 = vsub.f32 %v1411, %v1422
    %v1445 = vsub.f32 %v1412, %v1425
    %v1446 = vsub.f32 %v1413, %v1428
    %v1447 = vsub.f32 %v1414, %v1431
    %v1448 = vsub.f32 %v1415, %v1434
    %v1449 = vsub.f32 %v1416, %v1437
    %v1450 = vsub.f32 %v1417, %v1440
    %v1451 = vsub.f32 %v1418, %v1443
    %v1452 = vmul.f32 %v1444, 1.442695
    %v1453 = vpow.pop %v1452
    %v1454 = vmul.f32 %v1445, 1.442695
    %v1455 = vpow.pop %v1454
    %v1456 = vmul.f32 %v1446, 1.442695
    %v1457 = vpow.pop %v1456
    %v1458 = vmul.f32 %v1447, 1.442695
    %v1459 = vpow.pop %v1458
    %v1460 = vmul.f32 %v1448, 1.442695
    %v1461 = vpow.pop %v1460
    %v1462 = vmul.f32 %v1449, 1.442695
    %v1463 = vpow.pop %v1462
    %v1464 = vmul.f32 %v1450, 1.442695
    %v1465 = vpow.pop %v1464
    %v1466 = vmul.f32 %v1451, 1.442695
    %v1467 = vpow.pop %v1466
    %v1468 = vsel %vm1419, %v1453, 0.0
    %1469 = vadd.xlane.f32.xlu0 %v1468
    %v1470 = vpop.xlane.xlu0 %1469
    %v1471 = vsel %vm1419, %v1455, 0.0
    %1472 = vadd.xlane.f32.xlu0 %v1471
    %v1473 = vpop.xlane.xlu0 %1472
    %v1474 = vsel %vm1419, %v1457, 0.0
    %1475 = vadd.xlane.f32.xlu0 %v1474
    %v1476 = vpop.xlane.xlu0 %1475
    %v1477 = vsel %vm1419, %v1459, 0.0
    %1478 = vadd.xlane.f32.xlu0 %v1477
    %v1479 = vpop.xlane.xlu0 %1478
    %v1480 = vsel %vm1419, %v1461, 0.0
    %1481 = vadd.xlane.f32.xlu0 %v1480
    %v1482 = vpop.xlane.xlu0 %1481
    %v1483 = vsel %vm1419, %v1463, 0.0
    %1484 = vadd.xlane.f32.xlu0 %v1483
    %v1485 = vpop.xlane.xlu0 %1484
    %v1486 = vsel %vm1419, %v1465, 0.0
    %1487 = vadd.xlane.f32.xlu0 %v1486
    %v1488 = vpop.xlane.xlu0 %1487
    %v1489 = vsel %vm1419, %v1467, 0.0
    %1490 = vadd.xlane.f32.xlu0 %v1489
    %v1491 = vpop.xlane.xlu0 %1490
    %v1492 = vrcp.pop %v1470
    %v1493 = vrcp.pop %v1473
    %v1494 = vrcp.pop %v1476
    %v1495 = vrcp.pop %v1479
    %v1496 = vrcp.pop %v1482
    %v1497 = vrcp.pop %v1485
    %v1498 = vrcp.pop %v1488
    %v1499 = vrcp.pop %v1491
    %v1500 = vmul.f32 %v1453, %v1492
    %v1501 = vmul.f32 %v1455, %v1493
    %v1502 = vmul.f32 %v1457, %v1494
    %v1503 = vmul.f32 %v1459, %v1495
    %v1504 = vmul.f32 %v1461, %v1496
    %v1505 = vmul.f32 %v1463, %v1497
    %v1506 = vmul.f32 %v1465, %v1498
    %v1507 = vmul.f32 %v1467, %v1499
    %v1508 = vpack.c.bf16 %v1501, %v1500
    %v1509 = vpack.c.bf16 %v1503, %v1502
    %v1510 = vpack.c.bf16 %v1505, %v1504
    %v1511 = vpack.c.bf16 %v1507, %v1506
    %v1513 = vsel %vm1419, %v1508, 0
    %1515 = vmatprep.subr.bf16.mxu0 0
    %1516 = vmatpush1.bf16.msra.mxu0 %v310
    %1517 = vmatprep.subr.bf16.mxu0 0
    %1518 = vmatpush1.bf16.msra.mxu0 0
    %1519 = vmatprep.subr.bf16.mxu0 0
    %1520 = vmatpush1.bf16.msra.mxu0 0
    %1521 = vmatprep.subr.bf16.mxu0 0
    %1522 = vmatpush1.bf16.msra.mxu0 0
    %1523 = vmatprep.subr.bf16.mxu0 0
    %1524 = vmatpush1.bf16.msra.mxu0 0
    %1525 = vmatprep.subr.bf16.mxu0 0
    %1526 = vmatpush1.bf16.msra.mxu0 0
    %1527 = vmatprep.subr.bf16.mxu0 0
    %1528 = vmatpush1.bf16.msra.mxu0 0
    %1529 = vmatprep.subr.bf16.mxu0 0
    %1530 = vmatpush1.bf16.msra.mxu0 0
    %1531 = vmatprep.subr.bf16.mxu0 0
    %1532 = vmatpush1.bf16.msra.mxu0 0
    %1533 = vmatprep.subr.bf16.mxu0 0
    %1534 = vmatpush1.bf16.msra.mxu0 0
    %1535 = vmatprep.subr.bf16.mxu0 0
    %1536 = vmatpush1.bf16.msra.mxu0 0
    %1537 = vmatprep.subr.bf16.mxu0 0
    %1538 = vmatpush1.bf16.msra.mxu0 0
    %1539 = vmatprep.subr.bf16.mxu0 0
    %1540 = vmatpush1.bf16.msra.mxu0 0
    %1541 = vmatprep.subr.bf16.mxu0 0
    %1542 = vmatpush1.bf16.msra.mxu0 0
    %1543 = vmatprep.subr.bf16.mxu0 0
    %1544 = vmatpush1.bf16.msra.mxu0 0
    %1545 = vmatprep.subr.bf16.mxu0 0
    %1546 = vmatpush1.bf16.msra.mxu0 0
    %1547 = vmatprep.mubr.bf16.mxu0 0
    %1548 = vmatmul.mubr.bf16.gmra.mrb[0].mxu0 %v1513
    %v1549 = vpop.f32.mrb[0].mxu0
    %v1550 = vadd.f32 0.0, %v1549
    %v1551 = vpop.f32.mrb[0].mxu0
    %v1552 = vpop.f32.mrb[0].mxu0
    %v1553 = vadd.f32 0.0, %v1552
    %v1554 = vpop.f32.mrb[0].mxu0
    %1555 = vdwg.mxu0
    %v1557 = vsel %vm1419, %v1509, 0
    %1559 = vmatprep.subr.bf16.mxu0 0
    %1560 = vmatpush1.bf16.msra.mxu0 %v311
    %1561 = vmatprep.subr.bf16.mxu0 0
    %1562 = vmatpush1.bf16.msra.mxu0 0
    %1563 = vmatprep.subr.bf16.mxu0 0
    %1564 = vmatpush1.bf16.msra.mxu0 0
    %1565 = vmatprep.subr.bf16.mxu0 0
    %1566 = vmatpush1.bf16.msra.mxu0 0
    %1567 = vmatprep.subr.bf16.mxu0 0
    %1568 = vmatpush1.bf16.msra.mxu0 0
    %1569 = vmatprep.subr.bf16.mxu0 0
    %1570 = vmatpush1.bf16.msra.mxu0 0
    %1571 = vmatprep.subr.bf16.mxu0 0
    %1572 = vmatpush1.bf16.msra.mxu0 0
    %1573 = vmatprep.subr.bf16.mxu0 0
    %1574 = vmatpush1.bf16.msra.mxu0 0
    %1575 = vmatprep.subr.bf16.mxu0 0
    %1576 = vmatpush1.bf16.msra.mxu0 0
    %1577 = vmatprep.subr.bf16.mxu0 0
    %1578 = vmatpush1.bf16.msra.mxu0 0
    %1579 = vmatprep.subr.bf16.mxu0 0
    %1580 = vmatpush1.bf16.msra.mxu0 0
    %1581 = vmatprep.subr.bf16.mxu0 0
    %1582 = vmatpush1.bf16.msra.mxu0 0
    %1583 = vmatprep.subr.bf16.mxu0 0
    %1584 = vmatpush1.bf16.msra.mxu0 0
    %1585 = vmatprep.subr.bf16.mxu0 0
    %1586 = vmatpush1.bf16.msra.mxu0 0
    %1587 = vmatprep.subr.bf16.mxu0 0
    %1588 = vmatpush1.bf16.msra.mxu0 0
    %1589 = vmatprep.subr.bf16.mxu0 0
    %1590 = vmatpush1.bf16.msra.mxu0 0
    %1591 = vmatprep.mubr.bf16.mxu0 0
    %1592 = vmatmul.mubr.bf16.gmra.mrb[0].mxu0 %v1557
    %v1593 = vpop.f32.mrb[0].mxu0
    %v1594 = vadd.f32 0.0, %v1593
    %v1595 = vpop.f32.mrb[0].mxu0
    %v1596 = vpop.f32.mrb[0].mxu0
    %v1597 = vadd.f32 0.0, %v1596
    %v1598 = vpop.f32.mrb[0].mxu0
    %1599 = vdwg.mxu0
    %v1601 = vsel %vm1419, %v1510, 0
    %1603 = vmatprep.subr.bf16.mxu0 0
    %1604 = vmatpush1.bf16.msra.mxu0 %v312
    %1605 = vmatprep.subr.bf16.mxu0 0
    %1606 = vmatpush1.bf16.msra.mxu0 0
    %1607 = vmatprep.subr.bf16.mxu0 0
    %1608 = vmatpush1.bf16.msra.mxu0 0
    %1609 = vmatprep.subr.bf16.mxu0 0
    %1610 = vmatpush1.bf16.msra.mxu0 0
    %1611 = vmatprep.subr.bf16.mxu0 0
    %1612 = vmatpush1.bf16.msra.mxu0 0
    %1613 = vmatprep.subr.bf16.mxu0 0
    %1614 = vmatpush1.bf16.msra.mxu0 0
    %1615 = vmatprep.subr.bf16.mxu0 0
    %1616 = vmatpush1.bf16.msra.mxu0 0
    %1617 = vmatprep.subr.bf16.mxu0 0
    %1618 = vmatpush1.bf16.msra.mxu0 0
    %1619 = vmatprep.subr.bf16.mxu0 0
    %1620 = vmatpush1.bf16.msra.mxu0 0
    %1621 = vmatprep.subr.bf16.mxu0 0
    %1622 = vmatpush1.bf16.msra.mxu0 0
    %1623 = vmatprep.subr.bf16.mxu0 0
    %1624 = vmatpush1.bf16.msra.mxu0 0
    %1625 = vmatprep.subr.bf16.mxu0 0
    %1626 = vmatpush1.bf16.msra.mxu0 0
    %1627 = vmatprep.subr.bf16.mxu0 0
    %1628 = vmatpush1.bf16.msra.mxu0 0
    %1629 = vmatprep.subr.bf16.mxu0 0
    %1630 = vmatpush1.bf16.msra.mxu0 0
    %1631 = vmatprep.subr.bf16.mxu0 0
    %1632 = vmatpush1.bf16.msra.mxu0 0
    %1633 = vmatprep.subr.bf16.mxu0 0
    %1634 = vmatpush1.bf16.msra.mxu0 0
    %1635 = vmatprep.mubr.bf16.mxu0 0
    %1636 = vmatmul.mubr.bf16.gmra.mrb[0].mxu0 %v1601
    %v1637 = vpop.f32.mrb[0].mxu0
    %v1638 = vadd.f32 0.0, %v1637
    %v1639 = vpop.f32.mrb[0].mxu0
    %v1640 = vpop.f32.mrb[0].mxu0
    %v1641 = vadd.f32 0.0, %v1640
    %v1642 = vpop.f32.mrb[0].mxu0
    %1643 = vdwg.mxu0
    %v1645 = vsel %vm1419, %v1511, 0
    %1647 = vmatprep.subr.bf16.mxu0 0
    %1648 = vmatpush1.bf16.msra.mxu0 %v313
    %1649 = vmatprep.subr.bf16.mxu0 0
    %1650 = vmatpush1.bf16.msra.mxu0 0
    %1651 = vmatprep.subr.bf16.mxu0 0
    %1652 = vmatpush1.bf16.msra.mxu0 0
    %1653 = vmatprep.subr.bf16.mxu0 0
    %1654 = vmatpush1.bf16.msra.mxu0 0
    %1655 = vmatprep.subr.bf16.mxu0 0
    %1656 = vmatpush1.bf16.msra.mxu0 0
    %1657 = vmatprep.subr.bf16.mxu0 0
    %1658 = vmatpush1.bf16.msra.mxu0 0
    %1659 = vmatprep.subr.bf16.mxu0 0
    %1660 = vmatpush1.bf16.msra.mxu0 0
    %1661 = vmatprep.subr.bf16.mxu0 0
    %1662 = vmatpush1.bf16.msra.mxu0 0
    %1663 = vmatprep.subr.bf16.mxu0 0
    %1664 = vmatpush1.bf16.msra.mxu0 0
    %1665 = vmatprep.subr.bf16.mxu0 0
    %1666 = vmatpush1.bf16.msra.mxu0 0
    %1667 = vmatprep.subr.bf16.mxu0 0
    %1668 = vmatpush1.bf16.msra.mxu0 0
    %1669 = vmatprep.subr.bf16.mxu0 0
    %1670 = vmatpush1.bf16.msra.mxu0 0
    %1671 = vmatprep.subr.bf16.mxu0 0
    %1672 = vmatpush1.bf16.msra.mxu0 0
    %1673 = vmatprep.subr.bf16.mxu0 0
    %1674 = vmatpush1.bf16.msra.mxu0 0
    %1675 = vmatprep.subr.bf16.mxu0 0
    %1676 = vmatpush1.bf16.msra.mxu0 0
    %1677 = vmatprep.subr.bf16.mxu0 0
    %1678 = vmatpush1.bf16.msra.mxu0 0
    %1679 = vmatprep.mubr.bf16.mxu0 0
    %1680 = vmatmul.mubr.bf16.gmra.mrb[0].mxu0 %v1645
    %v1681 = vpop.f32.mrb[0].mxu0
    %v1682 = vadd.f32 0.0, %v1681
    %v1683 = vpop.f32.mrb[0].mxu0
    %v1684 = vpop.f32.mrb[0].mxu0
    %v1685 = vadd.f32 0.0, %v1684
    %v1686 = vpop.f32.mrb[0].mxu0
    %1687 = vdwg.mxu0
    %v1688 = vunpack.c.l.bf16 %v255
    %v1689 = vunpack.c.l.bf16 %v256
    %v1690 = vunpack.c.l.bf16 %v257
    %v1691 = vunpack.c.l.bf16 %v258
    %v1692 = vunpack.c.l.bf16 %v259
    %v1693 = vunpack.c.l.bf16 %v260
    %v1694 = vunpack.c.l.bf16 %v261
    %v1695 = vunpack.c.l.bf16 %v262
    %v1696 = vadd.f32 %v1688, %v1689
    %v1697 = vrot.slane %v1696, 4
    %v1698 = vadd.f32 %v1696, %v1697
    %v1699 = vrot.slane %v1698, 2
    %v1700 = vadd.f32 %v1698, %v1699
    %v1701 = vrot.slane %v1700, 1
    %v1702 = vadd.f32 %v1700, %v1701
    %v1703 = vadd.f32 %v1690, %v1691
    %v1704 = vrot.slane %v1703, 4
    %v1705 = vadd.f32 %v1703, %v1704
    %v1706 = vrot.slane %v1705, 2
    %v1707 = vadd.f32 %v1705, %v1706
    %v1708 = vrot.slane %v1707, 1
    %v1709 = vadd.f32 %v1707, %v1708
    %v1710 = vadd.f32 %v1692, %v1693
    %v1711 = vrot.slane %v1710, 4
    %v1712 = vadd.f32 %v1710, %v1711
    %v1713 = vrot.slane %v1712, 2
    %v1714 = vadd.f32 %v1712, %v1713
    %v1715 = vrot.slane %v1714, 1
    %v1716 = vadd.f32 %v1714, %v1715
    %v1717 = vadd.f32 %v1694, %v1695
    %v1718 = vrot.slane %v1717, 4
    %v1719 = vadd.f32 %v1717, %v1718
    %v1720 = vrot.slane %v1719, 2
    %v1721 = vadd.f32 %v1719, %v1720
    %v1722 = vrot.slane %v1721, 1
    %v1723 = vadd.f32 %v1721, %v1722
    %v1724 = vrcp.pop 16.0
    %v1725 = vmul.f32 %v1702, %v1724
    %v1726 = vmul.f32 %v1709, %v1724
    %v1727 = vmul.f32 %v1716, %v1724
    %v1728 = vmul.f32 %v1723, %v1724
    %v1733 = vsel %vm928, %v1726, %v1725
    %v1734 = vsel %vm930, %v1727, %v1733
    %v1735 = vsel %vm932, %v1728, %v1734
    %vm1741 = vcmask 1045509
    %v1742 = vsel %vm1741, %v759, %v757
    %vm1743 = vcmask 1046534
    %v1744 = vsel %vm1743, %v761, %v1742
    %vm1745 = vcmask 1047559
    %v1746 = vsel %vm1745, %v763, %v1744
    %vm1748 = vcmask 1043456
    %v1749 = vsel %vm1748, %v1735, %v1746
    %v1750 = vpack.c.bf16 %v1749, %v1749
    %v1751 = vld [vmem:[#allocation24] sm:$0xff]
    %v1752 = vld [vmem:[#allocation24 + $0x8] sm:$0xff]
    %v1753 = vld [vmem:[#allocation24 + $0x10] sm:$0xff]
    %v1754 = vld [vmem:[#allocation24 + $0x18] sm:$0xff]
    %v1755 = vld [vmem:[#allocation24 + $0x20] sm:$0xff]
    %v1756 = vld [vmem:[#allocation24 + $0x28] sm:$0xff]
    %v1757 = vld [vmem:[#allocation24 + $0x30] sm:$0xff]
    %v1758 = vld [vmem:[#allocation24 + $0x38] sm:$0xff]
    %v1759 = vld [vmem:[#allocation24 + $0x40] sm:$0xff]
    %v1760 = vld [vmem:[#allocation24 + $0x48] sm:$0xff]
    %v1761 = vld [vmem:[#allocation24 + $0x50] sm:$0xff]
    %v1762 = vld [vmem:[#allocation24 + $0x58] sm:$0xff]
    %v1763 = vld [vmem:[#allocation24 + $0x60] sm:$0xff]
    %v1764 = vld [vmem:[#allocation24 + $0x68] sm:$0xff]
    %v1765 = vld [vmem:[#allocation24 + $0x70] sm:$0xff]
    %v1766 = vld [vmem:[#allocation24 + $0x78] sm:$0xff]
    %v1767 = vld [vmem:[#allocation24 + $0x80] sm:$0xff]
    %v1768 = vld [vmem:[#allocation24 + $0x88] sm:$0xff]
    %v1769 = vld [vmem:[#allocation24 + $0x90] sm:$0xff]
    %v1770 = vld [vmem:[#allocation24 + $0x98] sm:$0xff]
    %v1771 = vld [vmem:[#allocation24 + $0xa0] sm:$0xff]
    %v1772 = vld [vmem:[#allocation24 + $0xa8] sm:$0xff]
    %v1773 = vld [vmem:[#allocation24 + $0xb0] sm:$0xff]
    %v1774 = vld [vmem:[#allocation24 + $0xb8] sm:$0xff]
    %v1775 = vld [vmem:[#allocation24 + $0xc0] sm:$0xff]
    %v1776 = vld [vmem:[#allocation24 + $0xc8] sm:$0xff]
    %v1777 = vld [vmem:[#allocation24 + $0xd0] sm:$0xff]
    %v1778 = vld [vmem:[#allocation24 + $0xd8] sm:$0xff]
    %v1779 = vld [vmem:[#allocation24 + $0xe0] sm:$0xff]
    %v1780 = vld [vmem:[#allocation24 + $0xe8] sm:$0xff]
    %v1781 = vld [vmem:[#allocation24 + $0xf0] sm:$0xff]
    %v1782 = vld [vmem:[#allocation24 + $0xf8] sm:$0xff]
    %v1783 = vld [vmem:[#allocation25] sm:$0xf]
    %v1785 = vlaneseq
    %v1786 = vshrl.u32 %v1785, 7
    %v1787 = vsub.s32 0, %v1786
    %v1788 = vrot.slane %v1783, %v1787
    %v1789 = vlaneseq
    %v1790 = vshrl.u32 %v1789, 7
    %v1791 = vsub.s32 1, %v1790
    %v1792 = vrot.slane %v1783, %v1791
    %v1793 = vlaneseq
    %v1794 = vshrl.u32 %v1793, 7
    %v1795 = vsub.s32 2, %v1794
    %v1796 = vrot.slane %v1783, %v1795
    %v1797 = vlaneseq
    %v1798 = vshrl.u32 %v1797, 7
    %v1799 = vsub.s32 3, %v1798
    %v1800 = vrot.slane %v1783, %v1799
    %v1837 = vunpack.c.l.b16 %v1751
    %v1838 = vunpack.c.h.b16 %v1751
    %v1839 = vunpack.c.l.b16 %v1752
    %v1840 = vunpack.c.h.b16 %v1752
    %v1841 = vunpack.c.l.b16 %v1753
    %v1842 = vunpack.c.h.b16 %v1753
    %v1843 = vunpack.c.l.b16 %v1754
    %v1844 = vunpack.c.h.b16 %v1754
    %v1845 = vunpack.c.l.b16 %v1755
    %v1846 = vunpack.c.h.b16 %v1755
    %v1847 = vunpack.c.l.b16 %v1756
    %v1848 = vunpack.c.h.b16 %v1756
    %v1849 = vunpack.c.l.b16 %v1757
    %v1850 = vunpack.c.h.b16 %v1757
    %v1851 = vunpack.c.l.b16 %v1758
    %v1852 = vunpack.c.h.b16 %v1758
    %v1853 = vunpack.c.l.b16 %v1759
    %v1854 = vunpack.c.h.b16 %v1759
    %v1855 = vunpack.c.l.b16 %v1760
    %v1856 = vunpack.c.h.b16 %v1760
    %v1857 = vunpack.c.l.b16 %v1761
    %v1858 = vunpack.c.h.b16 %v1761
    %v1859 = vunpack.c.l.b16 %v1762
    %v1860 = vunpack.c.h.b16 %v1762
    %v1861 = vunpack.c.l.b16 %v1763
    %v1862 = vunpack.c.h.b16 %v1763
    %v1863 = vunpack.c.l.b16 %v1764
    %v1864 = vunpack.c.h.b16 %v1764
    %v1865 = vunpack.c.l.b16 %v1765
    %v1866 = vunpack.c.h.b16 %v1765
    %v1867 = vunpack.c.l.b16 %v1766
    %v1868 = vunpack.c.h.b16 %v1766
    %v1869 = vunpack.c.l.b16 %v1767
    %v1870 = vunpack.c.h.b16 %v1767
    %v1871 = vunpack.c.l.b16 %v1768
    %v1872 = vunpack.c.h.b16 %v1768
    %v1873 = vunpack.c.l.b16 %v1769
    %v1874 = vunpack.c.h.b16 %v1769
    %v1875 = vunpack.c.l.b16 %v1770
    %v1876 = vunpack.c.h.b16 %v1770
    %v1877 = vunpack.c.l.b16 %v1771
    %v1878 = vunpack.c.h.b16 %v1771
    %v1879 = vunpack.c.l.b16 %v1772
    %v1880 = vunpack.c.h.b16 %v1772
    %v1881 = vunpack.c.l.b16 %v1773
    %v1882 = vunpack.c.h.b16 %v1773
    %v1883 = vunpack.c.l.b16 %v1774
    %v1884 = vunpack.c.h.b16 %v1774
    %v1885 = vunpack.c.l.b16 %v1775
    %v1886 = vunpack.c.h.b16 %v1775
    %v1887 = vunpack.c.l.b16 %v1776
    %v1888 = vunpack.c.h.b16 %v1776
    %v1889 = vunpack.c.l.b16 %v1777
    %v1890 = vunpack.c.h.b16 %v1777
    %v1891 = vunpack.c.l.b16 %v1778
    %v1892 = vunpack.c.h.b16 %v1778
    %v1893 = vunpack.c.l.b16 %v1779
    %v1894 = vunpack.c.h.b16 %v1779
    %v1895 = vunpack.c.l.b16 %v1780
    %v1896 = vunpack.c.h.b16 %v1780
    %v1897 = vunpack.c.l.b16 %v1781
    %v1898 = vunpack.c.h.b16 %v1781
    %v1899 = vunpack.c.l.b16 %v1782
    %v1900 = vunpack.c.h.b16 %v1782
    %v1901 = vpack.c.b16 %v1841, %v1837
    %v1902 = vpack.c.b16 %v1842, %v1838
    %v1903 = vpack.c.b16 %v1843, %v1839
    %v1904 = vpack.c.b16 %v1844, %v1840
    %v1905 = vpack.c.b16 %v1849, %v1845
    %v1906 = vpack.c.b16 %v1850, %v1846
    %v1907 = vpack.c.b16 %v1851, %v1847
    %v1908 = vpack.c.b16 %v1852, %v1848
    %v1909 = vpack.c.b16 %v1857, %v1853
    %v1910 = vpack.c.b16 %v1858, %v1854
    %v1911 = vpack.c.b16 %v1859, %v1855
    %v1912 = vpack.c.b16 %v1860, %v1856
    %v1913 = vpack.c.b16 %v1865, %v1861
    %v1914 = vpack.c.b16 %v1866, %v1862
    %v1915 = vpack.c.b16 %v1867, %v1863
    %v1916 = vpack.c.b16 %v1868, %v1864
    %v1917 = vpack.c.b16 %v1873, %v1869
    %v1918 = vpack.c.b16 %v1874, %v1870
    %v1919 = vpack.c.b16 %v1875, %v1871
    %v1920 = vpack.c.b16 %v1876, %v1872
    %v1921 = vpack.c.b16 %v1881, %v1877
    %v1922 = vpack.c.b16 %v1882, %v1878
    %v1923 = vpack.c.b16 %v1883, %v1879
    %v1924 = vpack.c.b16 %v1884, %v1880
    %v1925 = vpack.c.b16 %v1889, %v1885
    %v1926 = vpack.c.b16 %v1890, %v1886
    %v1927 = vpack.c.b16 %v1891, %v1887
    %v1928 = vpack.c.b16 %v1892, %v1888
    %v1929 = vpack.c.b16 %v1897, %v1893
    %v1930 = vpack.c.b16 %v1898, %v1894
    %v1931 = vpack.c.b16 %v1899, %v1895
    %v1932 = vpack.c.b16 %v1900, %v1896
    %1965 = vmatprep.subr.bf16.mxu0 %v1902
    %1966 = vmatpush1.bf16.msra.mxu0 %v1901
    %1967 = vmatprep.subr.bf16.mxu0 %v1906
    %1968 = vmatpush1.bf16.msra.mxu0 %v1905
    %1969 = vmatprep.subr.bf16.mxu0 %v1910
    %1970 = vmatpush1.bf16.msra.mxu0 %v1909
    %1971 = vmatprep.subr.bf16.mxu0 %v1914
    %1972 = vmatpush1.bf16.msra.mxu0 %v1913
    %1973 = vmatprep.subr.bf16.mxu0 %v1918
    %1974 = vmatpush1.bf16.msra.mxu0 %v1917
    %1975 = vmatprep.subr.bf16.mxu0 %v1922
    %1976 = vmatpush1.bf16.msra.mxu0 %v1921
    %1977 = vmatprep.subr.bf16.mxu0 %v1926
    %1978 = vmatpush1.bf16.msra.mxu0 %v1925
    %1979 = vmatprep.subr.bf16.mxu0 %v1930
    %1980 = vmatpush1.bf16.msra.mxu0 %v1929
    %1981 = vmatprep.subr.bf16.mxu0 0
    %1982 = vmatpush1.bf16.msra.mxu0 0
    %1983 = vmatprep.subr.bf16.mxu0 0
    %1984 = vmatpush1.bf16.msra.mxu0 0
    %1985 = vmatprep.subr.bf16.mxu0 0
    %1986 = vmatpush1.bf16.msra.mxu0 0
    %1987 = vmatprep.subr.bf16.mxu0 0
    %1988 = vmatpush1.bf16.msra.mxu0 0
    %1989 = vmatprep.subr.bf16.mxu0 0
    %1990 = vmatpush1.bf16.msra.mxu0 0
    %1991 = vmatprep.subr.bf16.mxu0 0
    %1992 = vmatpush1.bf16.msra.mxu0 0
    %1993 = vmatprep.subr.bf16.mxu0 0
    %1994 = vmatpush1.bf16.msra.mxu0 0
    %1995 = vmatprep.subr.bf16.mxu0 0
    %1996 = vmatpush1.bf16.msra.mxu0 0
    %1997 = vmatprep.mubr.bf16.mxu0 0
    %1998 = vmatmul.mubr.bf16.gmra.mrb[0].mxu0 %v1750
    %v1999 = vpop.f32.mrb[0].mxu0
    %v2000 = vadd.f32 %v1788, %v1999
    %v2001 = vpop.f32.mrb[0].mxu0
    %v2002 = vadd.f32 %v1792, %v2001
    %v2003 = vpop.f32.mrb[0].mxu0
    %v2004 = vpop.f32.mrb[0].mxu0
    %2005 = vdwg.mxu0
    %2006 = vmatprep.subr.bf16.mxu0 %v1904
    %2007 = vmatpush1.bf16.msra.mxu0 %v1903
    %2008 = vmatprep.subr.bf16.mxu0 %v1908
    %2009 = vmatpush1.bf16.msra.mxu0 %v1907
    %2010 = vmatprep.subr.bf16.mxu0 %v1912
    %2011 = vmatpush1.bf16.msra.mxu0 %v1911
    %2012 = vmatprep.subr.bf16.mxu0 %v1916
    %2013 = vmatpush1.bf16.msra.mxu0 %v1915
    %2014 = vmatprep.subr.bf16.mxu0 %v1920
    %2015 = vmatpush1.bf16.msra.mxu0 %v1919
    %2016 = vmatprep.subr.bf16.mxu0 %v1924
    %2017 = vmatpush1.bf16.msra.mxu0 %v1923
    %2018 = vmatprep.subr.bf16.mxu0 %v1928
    %2019 = vmatpush1.bf16.msra.mxu0 %v1927
    %2020 = vmatprep.subr.bf16.mxu0 %v1932
    %2021 = vmatpush1.bf16.msra.mxu0 %v1931
    %2022 = vmatprep.subr.bf16.mxu0 0
    %2023 = vmatpush1.bf16.msra.mxu0 0
    %2024 = vmatprep.subr.bf16.mxu0 0
    %2025 = vmatpush1.bf16.msra.mxu0 0
    %2026 = vmatprep.subr.bf16.mxu0 0
    %2027 = vmatpush1.bf16.msra.mxu0 0
    %2028 = vmatprep.subr.bf16.mxu0 0
    %2029 = vmatpush1.bf16.msra.mxu0 0
    %2030 = vmatprep.subr.bf16.mxu0 0
    %2031 = vmatpush1.bf16.msra.mxu0 0
    %2032 = vmatprep.subr.bf16.mxu0 0
    %2033 = vmatpush1.bf16.msra.mxu0 0
    %2034 = vmatprep.subr.bf16.mxu0 0
    %2035 = vmatpush1.bf16.msra.mxu0 0
    %2036 = vmatprep.subr.bf16.mxu0 0
    %2037 = vmatpush1.bf16.msra.mxu0 0
    %2038 = vmatprep.mubr.bf16.mxu0 0
    %2039 = vmatmul.mubr.bf16.gmra.mrb[0].mxu0 %v1750
    %v2040 = vpop.f32.mrb[0].mxu0
    %v2041 = vadd.f32 %v1796, %v2040
    %v2042 = vpop.f32.mrb[0].mxu0
    %v2043 = vadd.f32 %v1800, %v2042
    %v2044 = vpop.f32.mrb[0].mxu0
    %v2045 = vpop.f32.mrb[0].mxu0
    %2046 = vdwg.mxu0
    %v2047 = vmul.f32 %v2000, 0.5
    %v2048 = vmul.f32 %v2002, 0.5
    %v2049 = vmul.f32 %v2041, 0.5
    %v2050 = vmul.f32 %v2043, 0.5
    %v2051 = vmul.f32 %v2000, 0.044715
    %v2052 = vmul.f32 %v2002, 0.044715
    %v2053 = vmul.f32 %v2041, 0.044715
    %v2054 = vmul.f32 %v2043, 0.044715
    %v2055 = vmul.f32 %v2051, %v2000
    %v2056 = vmul.f32 %v2052, %v2002
    %v2057 = vmul.f32 %v2053, %v2041
    %v2058 = vmul.f32 %v2054, %v2043
    %v2059 = vmul.f32 %v2055, %v2000
    %v2060 = vmul.f32 %v2056, %v2002
    %v2061 = vmul.f32 %v2057, %v2041
    %v2062 = vmul.f32 %v2058, %v2043
    %v2063 = vadd.f32 %v2000, %v2059
    %v2064 = vadd.f32 %v2002, %v2060
    %v2065 = vadd.f32 %v2041, %v2061
    %v2066 = vadd.f32 %v2043, %v2062
    %v2067 = vmul.f32 %v2063, 0.7978846
    %v2068 = vmul.f32 %v2064, 0.7978846
    %v2069 = vmul.f32 %v2065, 0.7978846
    %v2070 = vmul.f32 %v2066, 0.7978846
    %v2071 = vtanh.pop %v2067
    %v2072 = vtanh.pop %v2068
    %v2073 = vtanh.pop %v2069
    %v2074 = vtanh.pop %v2070
    %v2075 = vadd.f32 %v2071, 1.0
    %v2076 = vadd.f32 %v2072, 1.0
    %v2077 = vadd.f32 %v2073, 1.0
    %v2078 = vadd.f32 %v2074, 1.0
    %v2079 = vmul.f32 %v2047, %v2075
    %v2080 = vmul.f32 %v2048, %v2076
    %v2081 = vmul.f32 %v2049, %v2077
    %v2082 = vmul.f32 %v2050, %v2078
    %v2083 = vld [vmem:[#allocation27] sm:$0xf]
    %v2085 = vlaneseq
    %v2086 = vshrl.u32 %v2085, 7
    %v2087 = vsub.s32 0, %v2086
    %v2088 = vrot.slane %v2083, %v2087
    %v2089 = vlaneseq
    %v2090 = vshrl.u32 %v2089, 7
    %v2091 = vsub.s32 1, %v2090
    %v2092 = vrot.slane %v2083, %v2091
    %v2093 = vlaneseq
    %v2094 = vshrl.u32 %v2093, 7
    %v2095 = vsub.s32 2, %v2094
    %v2096 = vrot.slane %v2083, %v2095
    %v2097 = vlaneseq
    %v2098 = vshrl.u32 %v2097, 7
    %v2099 = vsub.s32 3, %v2098
    %v2100 = vrot.slane %v2083, %v2099
    %v2105 = vmul.f32 %v2079, %v2088
    %v2106 = vmul.f32 %v2080, %v2092
    %v2107 = vmul.f32 %v2081, %v2096
    %v2108 = vmul.f32 %v2082, %v2100
    %v2109 = vsel %vm1748, %v2105, 0.0
    %v2110 = vsel %vm1748, %v2106, 0.0
    %v2111 = vadd.f32 %v2109, %v2110
    %2112 = vadd.xlane.f32.xlu0 %v2111
    %v2113 = vpop.xlane.xlu0 %2112
    %v2114 = vld [vmem:[#allocation2] sm:$0x1]
    %v2116 = vlaneseq
    %v2117 = vshrl.u32 %v2116, 7
    %v2118 = vsub.s32 0, %v2117
    %v2119 = vrot.slane %v2114, %v2118
    %v2121 = vadd.f32 %v2113, %v2119
    %v2122 = vtanh.pop %v2121
    %v2123 = vmul.f32 %v2122, 0.5
    %v2124 = vmul.f32 %v2122, 0.044715
    %v2125 = vmul.f32 %v2124, %v2122
    %v2126 = vmul.f32 %v2125, %v2122
    %v2127 = vadd.f32 %v2122, %v2126
    %v2128 = vmul.f32 %v2127, 0.7978846
    %v2129 = vtanh.pop %v2128
    %v2130 = vadd.f32 %v2129, 1.0
    %v2131 = vmul.f32 %v2123, %v2130
    %vm2132 = vcmask 1047556
    %v2133 = vsel %vm2132, %v2107, 0.0
    %v2134 = vsel %vm2132, %v2108, 0.0
    %v2135 = vadd.f32 %v2133, %v2134
    %2136 = vadd.xlane.f32.xlu0 %v2135
    %v2137 = vpop.xlane.xlu0 %2136
    %v2138 = vld [vmem:[#allocation3] sm:$0x1]
    %v2140 = vlaneseq
    %v2141 = vshrl.u32 %v2140, 7
    %v2142 = vsub.s32 0, %v2141
    %v2143 = vrot.slane %v2138, %v2142
    %v2145 = vadd.f32 %v2137, %v2143
    %v2146 = vtanh.pop %v2145
    %v2147 = vmul.f32 %v2146, 0.5
    %v2148 = vmul.f32 %v2146, 0.044715
    %v2149 = vmul.f32 %v2148, %v2146
    %v2150 = vmul.f32 %v2149, %v2146
    %v2151 = vadd.f32 %v2146, %v2150
    %v2152 = vmul.f32 %v2151, 0.7978846
    %v2153 = vtanh.pop %v2152
    %v2154 = vadd.f32 %v2153, 1.0
    %v2155 = vmul.f32 %v2147, %v2154
    %v2158 = vunpack.c.l.s4 1966171168
    %v2159 = vunpack.c.0.s8 %v2158
    %v2160 = vlaneseq
    %v2161 = vshrl.u32 %v2160, 7
    %v2162 = vsub.s32 %v2159, %v2161
    %v2163 = vrot.slane %v2131, %v2162
    %v2164 = vcombine.high %v2163, %v2163
    %v2166 = vunpack.c.l.s4 1966171168
    %v2167 = vunpack.c.0.s8 %v2166
    %v2168 = vlaneseq
    %v2169 = vshrl.u32 %v2168, 7
    %v2170 = vsub.s32 %v2167, %v2169
    %v2171 = vrot.slane %v2163, %v2170
    %v2173 = vunpack.c.l.s4 1966171168
    %v2174 = vunpack.c.0.s8 %v2173
    %v2175 = vlaneseq
    %v2176 = vshrl.u32 %v2175, 7
    %v2177 = vsub.s32 %v2174, %v2176
    %v2178 = vrot.slane %v2164, %v2177
    %v2179 = vcombine.high %v2171, %v2171
    %v2180 = vcombine.high %v2178, %v2178
    %v2181 = vlaneseq
    %v2182 = vshrl.u32 %v2181, 7
    %v2183 = vsub.s32 0, %v2182
    %v2184 = vrot.slane %v2171, %v2183
    %v2185 = vlaneseq
    %v2186 = vshrl.u32 %v2185, 7
    %v2187 = vsub.s32 0, %v2186
    %v2188 = vrot.slane %v2178, %v2187
    %v2189 = vlaneseq
    %v2190 = vshrl.u32 %v2189, 7
    %v2191 = vsub.s32 0, %v2190
    %v2192 = vrot.slane %v2179, %v2191
    %v2193 = vlaneseq
    %v2194 = vshrl.u32 %v2193, 7
    %v2195 = vsub.s32 0, %v2194
    %v2196 = vrot.slane %v2180, %v2195
    %2197 = vset.pattern.permute.xlu0 0
    %2198 = vperm.xlu0 %2197, %v2184
    %v2199 = vpop.permute.xlu0 %2198
    %2201 = vset.pattern.permute.xlu0 0
    %2202 = vperm.xlu0 %2201, %v2188
    %v2203 = vpop.permute.xlu0 %2202
    %2205 = vset.pattern.permute.xlu0 0
    %2206 = vperm.xlu0 %2205, %v2192
    %v2207 = vpop.permute.xlu0 %2206
    %2209 = vset.pattern.permute.xlu0 0
    %2210 = vperm.xlu0 %2209, %v2196
    %v2211 = vpop.permute.xlu0 %2210
    %v2213 = vmul.f32 %v2199, %v1550
    %v2214 = vmul.f32 %v2203, %v1594
    %v2215 = vmul.f32 %v2207, %v1638
    %v2216 = vmul.f32 %v2211, %v1682
    %v2218 = vcombine.high %v2155, %v2155
    %v2220 = vunpack.c.l.s4 1966171168
    %v2221 = vunpack.c.0.s8 %v2220
    %v2222 = vlaneseq
    %v2223 = vshrl.u32 %v2222, 7
    %v2224 = vsub.s32 %v2221, %v2223
    %v2225 = vrot.slane %v2218, %v2224
    %v2226 = vcombine.high %v2225, %v2225
    %v2228 = vunpack.c.l.s4 1966171168
    %v2229 = vunpack.c.0.s8 %v2228
    %v2230 = vlaneseq
    %v2231 = vshrl.u32 %v2230, 7
    %v2232 = vsub.s32 %v2229, %v2231
    %v2233 = vrot.slane %v2225, %v2232
    %v2235 = vunpack.c.l.s4 1966171168
    %v2236 = vunpack.c.0.s8 %v2235
    %v2237 = vlaneseq
    %v2238 = vshrl.u32 %v2237, 7
    %v2239 = vsub.s32 %v2236, %v2238
    %v2240 = vrot.slane %v2226, %v2239
    %v2241 = vcombine.high %v2233, %v2233
    %v2242 = vcombine.high %v2240, %v2240
    %v2243 = vlaneseq
    %v2244 = vshrl.u32 %v2243, 7
    %v2245 = vsub.s32 0, %v2244
    %v2246 = vrot.slane %v2233, %v2245
    %v2247 = vlaneseq
    %v2248 = vshrl.u32 %v2247, 7
    %v2249 = vsub.s32 0, %v2248
    %v2250 = vrot.slane %v2240, %v2249
    %v2251 = vlaneseq
    %v2252 = vshrl.u32 %v2251, 7
    %v2253 = vsub.s32 0, %v2252
    %v2254 = vrot.slane %v2241, %v2253
    %v2255 = vlaneseq
    %v2256 = vshrl.u32 %v2255, 7
    %v2257 = vsub.s32 0, %v2256
    %v2258 = vrot.slane %v2242, %v2257
    %2259 = vset.pattern.permute.xlu0 0
    %2260 = vperm.xlu0 %2259, %v2246
    %v2261 = vpop.permute.xlu0 %2260
    %2263 = vset.pattern.permute.xlu0 0
    %2264 = vperm.xlu0 %2263, %v2250
    %v2265 = vpop.permute.xlu0 %2264
    %2267 = vset.pattern.permute.xlu0 0
    %2268 = vperm.xlu0 %2267, %v2254
    %v2269 = vpop.permute.xlu0 %2268
    %2271 = vset.pattern.permute.xlu0 0
    %2272 = vperm.xlu0 %2271, %v2258
    %v2273 = vpop.permute.xlu0 %2272
    %v2275 = vmul.f32 %v2261, %v1553
    %v2276 = vmul.f32 %v2265, %v1597
    %v2277 = vmul.f32 %v2269, %v1641
    %v2278 = vmul.f32 %v2273, %v1685
    %v2279 = vadd.f32 %v2213, %v2275
    %v2280 = vadd.f32 %v2214, %v2276
    %v2281 = vadd.f32 %v2215, %v2277
    %v2282 = vadd.f32 %v2216, %v2278
    %2283 = vadd.xlane.f32.xlu0 %v2279
    %v2284 = vpop.xlane.xlu0 %2283
    %2285 = vadd.xlane.f32.xlu0 %v2280
    %v2286 = vpop.xlane.xlu0 %2285
    %2287 = vadd.xlane.f32.xlu0 %v2281
    %v2288 = vpop.xlane.xlu0 %2287
    %2289 = vadd.xlane.f32.xlu0 %v2282
    %v2290 = vpop.xlane.xlu0 %2289
    %v2291 = vrcp.pop 128.0
    %v2292 = vmul.f32 %v2284, %v2291
    %v2293 = vmul.f32 %v2286, %v2291
    %v2294 = vmul.f32 %v2288, %v2291
    %v2295 = vmul.f32 %v2290, %v2291
    %v2296 = vsub.f32 %v2279, %v2292
    %v2297 = vsub.f32 %v2280, %v2293
    %v2298 = vsub.f32 %v2281, %v2294
    %v2299 = vsub.f32 %v2282, %v2295
    %v2300 = vmul.f32 %v2296, %v2296
    %v2301 = vmul.f32 %v2297, %v2297
    %v2302 = vmul.f32 %v2298, %v2298
    %v2303 = vmul.f32 %v2299, %v2299
    %2304 = vadd.xlane.f32.xlu0 %v2300
    %v2305 = vpop.xlane.xlu0 %2304
    %2306 = vadd.xlane.f32.xlu0 %v2301
    %v2307 = vpop.xlane.xlu0 %2306
    %2308 = vadd.xlane.f32.xlu0 %v2302
    %v2309 = vpop.xlane.xlu0 %2308
    %2310 = vadd.xlane.f32.xlu0 %v2303
    %v2311 = vpop.xlane.xlu0 %2310
    %v2312 = vmul.f32 %v2305, %v2291
    %v2313 = vmul.f32 %v2307, %v2291
    %v2314 = vmul.f32 %v2309, %v2291
    %v2315 = vmul.f32 %v2311, %v2291
    %v2316 = vadd.f32 %v2312, 1e-05
    %v2317 = vadd.f32 %v2313, 1e-05
    %v2318 = vadd.f32 %v2314, 1e-05
    %v2319 = vadd.f32 %v2315, 1e-05
    %v2320 = vrsqrt.pop %v2316
    %v2321 = vrsqrt.pop %v2317
    %v2322 = vrsqrt.pop %v2318
    %v2323 = vrsqrt.pop %v2319
    %v2324 = vmul.f32 %v2296, %v2320
    %v2325 = vmul.f32 %v2297, %v2321
    %v2326 = vmul.f32 %v2298, %v2322
    %v2327 = vmul.f32 %v2299, %v2323
    %2328 = vst [vmem:[#allocation28] sm:$0xff] %v2324
    %2329 = vst [vmem:[#allocation28 + $0x8] sm:$0xff] %v2325
    %2330 = vst [vmem:[#allocation28 + $0x10] sm:$0xff] %v2326
    %2331 = vst [vmem:[#allocation28 + $0x18] sm:$0xff] %v2327
    // Predicated region
    $region130: #{multimodal_token_compressor.1} parent=1 // pred_check
      _
    $region131: #{multimodal_token_compressor.1} parent=1 // pred_check_branch
      %2333 = sbr.rel (0) target = $region133
    $region132: #{multimodal_token_compressor.1} parent=1 // pred_region
      %s2335 = ssub.s32 512, 512
      %2336 = vsyncadd [#allocation6], %s2335
      %s2337 = sshll.u32 [#allocation28], 4
      %s2338 = int_to_ptr.vmem [resolvable:$true] %s2337
      %2343 = dma.vmem_to_hbm [thread:$0]  %s2338, 512, %s17, [#allocation6], 128, 128, 8
    $region133: #{multimodal_token_compressor.1} parent=1 // pred_fallthru
      _
    // Predicated region
    $region134: #{multimodal_token_compressor.1} parent=1 // pred_check
      _
    $region135: #{multimodal_token_compressor.1} parent=1 // pred_check_branch
      %2345 = sbr.rel (0) target = $region137
    $region136: #{multimodal_token_compressor.1} parent=1 // pred_region
      %2346 = dma.done [#allocation6], 512
    $region137: #{multimodal_token_compressor.1} parent=1 // pred_fallthru
      _
    %2347 = vsyncpa [#allocation5], 1
    %2348 = vsyncpa [#allocation8], 1
    %2349 = vsyncpa [#allocation11], 1
    %2350 = vsyncpa [#allocation14], 1
    %2351 = vsyncpa [#allocation17], 1
    %2352 = vsyncpa [#allocation20], 1
    %2353 = vsyncpa [#allocation23], 1
    %2354 = vsyncpa [#allocation26], 1
    %2355 = vsyncpa [#allocation6], 1

</llo_original>
